<compile_context>
chip_gen: v6e
topology: v6e:2x2x1
jax: 0.10.0
libtpu: 0.0.40
codegen_flags: <defaults>
</compile_context>

<pallas_src>
import functools

import jax
import jax.numpy as jnp
from jax.experimental import pallas as pl
from jax.experimental.pallas import tpu as pltpu


def _residual_se_kernel(NB, H, W, x_ref, w12_ref, w2_ref, shifts_ref, sew_ref,
                        bse1_ref, masks_ref, o_ref, patch_ref):
    """Fused forward for NB images folded onto the lane axis, channels-first."""
    HW = H * W
    NHW = NB * HW
    F = o_ref.shape[1]
    R = bse1_ref.shape[1]

    x = x_ref[...]                                      # (Cin, NHW) f32

    sh = shifts_ref[...]                                # (F, 4)
    c1, c2, cs, bse2 = sh[:, 0:1], sh[:, 1:2], sh[:, 2:3], sh[:, 3:4]

    # conv1 (1x1) and shortcut conv (1x1), BN scales pre-folded into the
    # weights, fused into one MXU matmul: (2F, Cin) @ (Cin, NHW).
    both = jnp.dot(w12_ref[...], x, preferred_element_type=jnp.float32)
    h1 = jnp.maximum(both[:F, :] + c1, 0.0)             # conv1 + bn1 + relu1
    sc = both[F:, :] + cs                               # shortcut conv + bn

    # conv2 (3x3, padding=1): the 9 taps are shifted copies of h1 built with
    # XLU lane rotations + host-precomputed 0/1 boundary masks (emulating the
    # zero pad and the image boundaries), staged into one (9F, NHW) im2col
    # scratch and consumed by a single K = 9F MXU matmul.
    for j in range(9):
        dy, dx = j // 3 - 1, j % 3 - 1
        t = h1
        s = (-(dy * W + dx)) % NHW
        if s:
            t = pltpu.roll(t, shift=s, axis=1)          # t[:, p] = h1[:, p+dy*W+dx]
        if dy or dx:
            t = t * masks_ref[j:j + 1, :]               # zero padding / edge taps
        patch_ref[j * F:(j + 1) * F, :] = t
    h2 = jnp.dot(w2_ref[...], patch_ref[...],
                 preferred_element_type=jnp.float32)    # (F, NHW)

    # bn2 shift + residual add + relu2
    y = jnp.maximum(h2 + c2 + sc, 0.0)                  # (F, NHW)

    # Squeeze-Excitation (per image): bottleneck matmuls are (F,R)/(R,F) with
    # tiny R, so keep them on the VPU/XLU instead of paying MXU push/pop.
    sew = sew_ref[...]                                  # (F, 2R)
    wse1, wse2t = sew[:, :R], sew[:, R:]
    bse1 = bse1_ref[...]                                # (1, R)
    for n in range(NB):                                 # static, lane-aligned slices
        y_n = y[:, n * HW:(n + 1) * HW]                 # (F, HW)
        pooled = jnp.mean(y_n, axis=1, keepdims=True)   # (F, 1) global avg pool
        z = jnp.maximum(jnp.sum(wse1 * pooled, axis=0, keepdims=True) + bse1, 0.0)
        gate = jax.nn.sigmoid(jnp.sum(wse2t * z, axis=1, keepdims=True) + bse2)
        o_ref[n] = (y_n * gate).astype(o_ref.dtype)     # lane-dense (HW % 128 == 0)


def modified_residual_block(x_nchw, params, images_per_block=None):
    """x_nchw: (N, Cin, H, W) float32 (PyTorch layout). Returns (N, F, H, W)."""
    (w1, a1, c1, w2, a2, c2, ws, as_, cs, wse1, bse1, wse2, bse2) = params
    N, Cin, H, W = x_nchw.shape
    F = w1.shape[1]
    R = wse1.shape[1]
    HW = H * W
    NB = N if images_per_block is None else images_per_block   # v7x: use N // 2
    assert N % NB == 0, (N, NB)
    G = N // NB
    NHW = NB * HW

    # Fold eval-mode BN scales into the conv weights; pre-transpose everything
    # to channels-first; coalesce the small per-channel vectors.
    w12 = jnp.concatenate([(w1 * a1).T, (ws * as_).T], axis=0)            # (2F, Cin)
    w2flat = jnp.concatenate([(w2[k] * a2).T for k in range(9)], axis=1)  # (F, 9F)
    shifts = jnp.concatenate([c1.T, c2.T, cs.T, bse2.T], axis=1)          # (F, 4)
    sew = jnp.concatenate([wse1, wse2.T], axis=1)                         # (F, 2R)

    # Whole block of NB images folded onto the lane axis (images contiguous).
    x_cf = x_nchw.reshape(N, Cin, HW).transpose(1, 0, 2).reshape(Cin, N * HW)

    # Grid-invariant zero-pad masks for the 9 conv2 taps, built on the host.
    # row = (pos // W) % H also cuts taps at image (not just row) boundaries.
    pos = jnp.arange(NHW, dtype=jnp.int32)
    row = (pos // W) % H
    col = pos % W
    mrows = []
    for j in range(9):
        dy, dx = j // 3 - 1, j % 3 - 1
        ok = jnp.ones((NHW,), jnp.float32)
        if dy == -1:
            ok = ok * (row >= 1).astype(jnp.float32)
        elif dy == 1:
            ok = ok * (row <= H - 2).astype(jnp.float32)
        if dx == -1:
            ok = ok * (col >= 1).astype(jnp.float32)
        elif dx == 1:
            ok = ok * (col <= W - 2).astype(jnp.float32)
        mrows.append(ok)
    masks = jnp.stack(mrows, axis=0)                                      # (9, NHW)

    grid_spec = pltpu.PrefetchScalarGridSpec(
        num_scalar_prefetch=0,
        grid=(G,),
        in_specs=[
            pl.BlockSpec((Cin, NHW), lambda g: (0, g)),
            pl.BlockSpec((2 * F, Cin), lambda g: (0, 0)),
            pl.BlockSpec((F, 9 * F), lambda g: (0, 0)),
            pl.BlockSpec((F, 4), lambda g: (0, 0)),
            pl.BlockSpec((F, 2 * R), lambda g: (0, 0)),
            pl.BlockSpec((1, R), lambda g: (0, 0)),
            pl.BlockSpec((9, NHW), lambda g: (0, 0)),
        ],
        out_specs=pl.BlockSpec((NB, F, HW), lambda g: (g, 0, 0)),
        scratch_shapes=[pltpu.VMEM((9 * F, NHW), jnp.float32)],
    )

    flops = N * (2 * HW * Cin * 2 * F + 2 * HW * (9 * F) * F + 4 * F * R)
    bytes_accessed = 4 * (x_cf.size + N * F * HW + w12.size + w2flat.size
                          + shifts.size + sew.size + bse1.size + masks.size)

    out = pl.pallas_call(
        functools.partial(_residual_se_kernel, NB, H, W),
        out_shape=jax.ShapeDtypeStruct((N, F, HW), jnp.float32),
        grid_spec=grid_spec,
        compiler_params=pltpu.CompilerParams(
            dimension_semantics=("parallel",)),   # blocks independent (v7x 2 TCs)
        cost_estimate=pl.CostEstimate(
            flops=flops, transcendentals=N * F, bytes_accessed=bytes_accessed),
    )(x_cf, w12, w2flat, shifts, sew, bse1, masks)
    return out.reshape(N, F, H, W)


def reference(x_nchw, params):
    """Pure-JAX reference with identical (folded-BN, eval-mode) semantics."""
    (w1, a1, c1, w2, a2, c2, ws, as_, cs, wse1, bse1, wse2, bse2) = params
    N, Cin, H, W = x_nchw.shape
    F = w1.shape[1]
    x2d = x_nchw.reshape(N, Cin, H * W)

    bc3 = lambda v: v.reshape(1, F, 1)
    bc4 = lambda v: v.reshape(1, F, 1, 1)

    h1 = jnp.einsum('cf,ncp->nfp', w1, x2d) * bc3(a1) + bc3(c1)
    h1 = jnp.maximum(h1, 0.0).reshape(N, F, H, W)
    pad = jnp.pad(h1, ((0, 0), (0, 0), (1, 1), (1, 1)))
    acc = jnp.zeros((N, F, H, W), jnp.float32)
    for k in range(9):
        ky, kx = k // 3, k % 3
        acc = acc + jnp.einsum('cf,nchw->nfhw', w2[k],
                               pad[:, :, ky:ky + H, kx:kx + W])
    h2 = acc * bc4(a2) + bc4(c2)
    sc = (jnp.einsum('cf,ncp->nfp', ws, x2d) * bc3(as_)
          + bc3(cs)).reshape(N, F, H, W)
    y = jnp.maximum(h2 + sc, 0.0)
    pooled = jnp.mean(y, axis=(2, 3))                    # (N, F)
    z = jnp.maximum(pooled @ wse1 + bse1, 0.0)           # (N, R)
    gate = jax.nn.sigmoid(z @ wse2 + bse2)               # (N, F)
    return y * gate[:, :, None, None]


def make_params(key, in_channels, filters, reduction_ratio=16):
    """Deterministic synthetic parameters. BN is folded: y = conv*scale + shift."""
    eps = 1e-5
    reduced = max(filters // reduction_ratio, 1)
    ks = list(jax.random.split(key, 20))

    def normal(k, shape, s=0.1):
        return (s * jax.random.normal(k, shape)).astype(jnp.float32)

    def bn_fold(kg, kb, km, kv, bias):
        gamma = 1.0 + normal(kg, bias.shape)
        beta = normal(kb, bias.shape)
        mean = normal(km, bias.shape)
        var = jnp.abs(normal(kv, bias.shape)) + 0.5
        scale = gamma / jnp.sqrt(var + eps)
        shift = beta + (bias - mean) * scale
        return scale.reshape(1, -1), shift.reshape(1, -1)

    w1 = normal(ks[0], (in_channels, filters), 0.2)
    b1 = normal(ks[1], (filters,))
    a1, c1 = bn_fold(ks[2], ks[3], ks[4], ks[5], b1)

    w2 = normal(ks[6], (9, filters, filters), 0.1)
    b2 = normal(ks[7], (filters,))
    a2, c2 = bn_fold(ks[8], ks[9], ks[10], ks[11], b2)

    ws = normal(ks[12], (in_channels, filters), 0.2)
    bs = normal(ks[13], (filters,))
    as_, cs = bn_fold(ks[14], ks[15], ks[16], ks[17], bs)

    wse1 = normal(ks[18], (filters, reduced), 0.3)
    bse1 = jnp.zeros((1, reduced), jnp.float32) + 0.05
    wse2 = normal(ks[19], (reduced, filters), 0.3)
    bse2 = jnp.zeros((1, filters), jnp.float32) + 0.02

    return (w1, a1, c1, w2, a2, c2, ws, as_, cs, wse1, bse1, wse2, bse2)


if __name__ == "__main__":
    # in_channels=4, out_channels=64 -> filters = 64 // 4 = 16, SE reduced = 1.
    N, H, W = 2, 16, 16
    in_channels, out_channels = 4, 64
    filters = out_channels // 4

    key = jax.random.PRNGKey(0)
    kx, kp = jax.random.split(key)
    x = jax.random.normal(kx, (N, in_channels, H, W), dtype=jnp.float32)  # NCHW
    params = make_params(kp, in_channels, filters)

    out = jax.block_until_ready(modified_residual_block(x, params))
    ref = jax.block_until_ready(reference(x, params))

    assert out.shape == (N, filters, H, W), out.shape
    err = float(jnp.max(jnp.abs(out - ref)))
    assert jnp.allclose(out, ref, rtol=1e-4, atol=1e-4), "max abs err = %g" % err
    print("KERNEL_OK")
</pallas_src>

<mosaic_0001>
module attributes {stable_mosaic.version = 11 : i64} {
  func.func @_residual_se_kernel(%arg0: i32, %arg1: memref<4x512xf32, #tpu.memory_space<vmem>>, %arg2: memref<32x4xf32, #tpu.memory_space<vmem>>, %arg3: memref<16x144xf32, #tpu.memory_space<vmem>>, %arg4: memref<16x4xf32, #tpu.memory_space<vmem>>, %arg5: memref<16x2xf32, #tpu.memory_space<vmem>>, %arg6: memref<1x1xf32, #tpu.memory_space<vmem>>, %arg7: memref<9x512xf32, #tpu.memory_space<vmem>>, %arg8: memref<2x16x256xf32, #tpu.memory_space<vmem>>, %arg9: memref<144x512xf32, #tpu.memory_space<vmem>>) attributes {dimension_semantics = [#tpu.dimension_semantics<parallel>], iteration_bounds = array<i64: 1>, scalar_prefetch = 0 : i64, scratch_operands = 1 : i64, tpu.core_type = #tpu.core_type<tc>, window_params = [{transform_indices = @transform_0, window_bounds = array<i64: 4, 512>}, {pipeline_mode = #tpu.pipeline_mode<synchronous>, transform_indices = @transform_1, window_bounds = array<i64: 32, 4>}, {pipeline_mode = #tpu.pipeline_mode<synchronous>, transform_indices = @transform_2, window_bounds = array<i64: 16, 144>}, {pipeline_mode = #tpu.pipeline_mode<synchronous>, transform_indices = @transform_3, window_bounds = array<i64: 16, 4>}, {pipeline_mode = #tpu.pipeline_mode<synchronous>, transform_indices = @transform_4, window_bounds = array<i64: 16, 2>}, {pipeline_mode = #tpu.pipeline_mode<synchronous>, transform_indices = @transform_5, window_bounds = array<i64: 1, 1>}, {pipeline_mode = #tpu.pipeline_mode<synchronous>, transform_indices = @transform_6, window_bounds = array<i64: 9, 512>}, {transform_indices = @transform_7, window_bounds = array<i64: 2, 16, 256>}]} {
    %c0 = arith.constant 0 : index
    %c0_0 = arith.constant 0 : index
    %0 = vector.load %arg1[%c0, %c0_0] : memref<4x512xf32, #tpu.memory_space<vmem>>, vector<4x512xf32>
    %c0_1 = arith.constant 0 : index
    %c0_2 = arith.constant 0 : index
    %1 = vector.load %arg4[%c0_1, %c0_2] : memref<16x4xf32, #tpu.memory_space<vmem>>, vector<16x4xf32>
    %2 = vector.extract_strided_slice %1 {offsets = [0, 0], sizes = [16, 1], strides = [1, 1]} : vector<16x4xf32> to vector<16x1xf32>
    %3 = vector.extract_strided_slice %1 {offsets = [0, 1], sizes = [16, 1], strides = [1, 1]} : vector<16x4xf32> to vector<16x1xf32>
    %4 = vector.extract_strided_slice %1 {offsets = [0, 2], sizes = [16, 1], strides = [1, 1]} : vector<16x4xf32> to vector<16x1xf32>
    %5 = vector.extract_strided_slice %1 {offsets = [0, 3], sizes = [16, 1], strides = [1, 1]} : vector<16x4xf32> to vector<16x1xf32>
    %c0_3 = arith.constant 0 : index
    %c0_4 = arith.constant 0 : index
    %6 = vector.load %arg2[%c0_3, %c0_4] : memref<32x4xf32, #tpu.memory_space<vmem>>, vector<32x4xf32>
    %cst = arith.constant dense<0.000000e+00> : vector<32x512xf32>
    %7 = tpu.matmul %6, %0, %cst {dimension_numbers = #tpu.dot_dimension_numbers<[1], [0], [0], [1], [0, 0, 1, 1], [], []>} : vector<32x4xf32>, vector<4x512xf32>, vector<32x512xf32> -> vector<32x512xf32>
    %8 = vector.extract_strided_slice %7 {offsets = [0, 0], sizes = [16, 512], strides = [1, 1]} : vector<32x512xf32> to vector<16x512xf32>
    %9 = vector.broadcast %2 : vector<16x1xf32> to vector<16x512xf32>
    %10 = arith.addf %8, %9 : vector<16x512xf32>
    %cst_5 = arith.constant 0.000000e+00 : f32
    %11 = vector.broadcast %cst_5 : f32 to vector<16x512xf32>
    %12 = arith.maximumf %10, %11 : vector<16x512xf32>
    %13 = vector.extract_strided_slice %7 {offsets = [16, 0], sizes = [16, 512], strides = [1, 1]} : vector<32x512xf32> to vector<16x512xf32>
    %14 = vector.broadcast %4 : vector<16x1xf32> to vector<16x512xf32>
    %15 = arith.addf %13, %14 : vector<16x512xf32>
    %c17_i32 = arith.constant 17 : i32
    %16 = tpu.dynamic_rotate %12 by %c17_i32 dim 1 : vector<16x512xf32>, i32 -> vector<16x512xf32>
    %c0_6 = arith.constant 0 : index
    %c0_7 = arith.constant 0 : index
    %17 = vector.load %arg7[%c0_6, %c0_7] : memref<9x512xf32, #tpu.memory_space<vmem>>, vector<1x512xf32>
    %18 = vector.broadcast %17 : vector<1x512xf32> to vector<16x512xf32>
    %19 = arith.mulf %16, %18 : vector<16x512xf32>
    %c0_8 = arith.constant 0 : index
    %c0_9 = arith.constant 0 : index
    %20 = vector.load %arg9[%c0_8, %c0_9] : memref<144x512xf32, #tpu.memory_space<vmem>>, vector<16x512xf32>
    tpu.vector_store %arg9[%c0_8, %c0_9], %19 {strides = array<i32>} : memref<144x512xf32, #tpu.memory_space<vmem>>, vector<16x512xf32>,
    %c16_i32 = arith.constant 16 : i32
    %21 = tpu.dynamic_rotate %12 by %c16_i32 dim 1 : vector<16x512xf32>, i32 -> vector<16x512xf32>
    %c1 = arith.constant 1 : index
    %c0_10 = arith.constant 0 : index
    %22 = vector.load %arg7[%c1, %c0_10] : memref<9x512xf32, #tpu.memory_space<vmem>>, vector<1x512xf32>
    %23 = vector.broadcast %22 : vector<1x512xf32> to vector<16x512xf32>
    %24 = arith.mulf %21, %23 : vector<16x512xf32>
    %c16 = arith.constant 16 : index
    %c0_11 = arith.constant 0 : index
    %25 = vector.load %arg9[%c16, %c0_11] : memref<144x512xf32, #tpu.memory_space<vmem>>, vector<16x512xf32>
    tpu.vector_store %arg9[%c16, %c0_11], %24 {strides = array<i32>} : memref<144x512xf32, #tpu.memory_space<vmem>>, vector<16x512xf32>,
    %c15_i32 = arith.constant 15 : i32
    %26 = tpu.dynamic_rotate %12 by %c15_i32 dim 1 : vector<16x512xf32>, i32 -> vector<16x512xf32>
    %c2 = arith.constant 2 : index
    %c0_12 = arith.constant 0 : index
    %27 = vector.load %arg7[%c2, %c0_12] : memref<9x512xf32, #tpu.memory_space<vmem>>, vector<1x512xf32>
    %28 = vector.broadcast %27 : vector<1x512xf32> to vector<16x512xf32>
    %29 = arith.mulf %26, %28 : vector<16x512xf32>
    %c32 = arith.constant 32 : index
    %c0_13 = arith.constant 0 : index
    %30 = vector.load %arg9[%c32, %c0_13] : memref<144x512xf32, #tpu.memory_space<vmem>>, vector<16x512xf32>
    tpu.vector_store %arg9[%c32, %c0_13], %29 {strides = array<i32>} : memref<144x512xf32, #tpu.memory_space<vmem>>, vector<16x512xf32>,
    %c1_i32 = arith.constant 1 : i32
    %31 = tpu.dynamic_rotate %12 by %c1_i32 dim 1 : vector<16x512xf32>, i32 -> vector<16x512xf32>
    %c3 = arith.constant 3 : index
    %c0_14 = arith.constant 0 : index
    %32 = vector.load %arg7[%c3, %c0_14] : memref<9x512xf32, #tpu.memory_space<vmem>>, vector<1x512xf32>
    %33 = vector.broadcast %32 : vector<1x512xf32> to vector<16x512xf32>
    %34 = arith.mulf %31, %33 : vector<16x512xf32>
    %c48 = arith.constant 48 : index
    %c0_15 = arith.constant 0 : index
    %35 = vector.load %arg9[%c48, %c0_15] : memref<144x512xf32, #tpu.memory_space<vmem>>, vector<16x512xf32>
    tpu.vector_store %arg9[%c48, %c0_15], %34 {strides = array<i32>} : memref<144x512xf32, #tpu.memory_space<vmem>>, vector<16x512xf32>,
    %c64 = arith.constant 64 : index
    %c0_16 = arith.constant 0 : index
    %36 = vector.load %arg9[%c64, %c0_16] : memref<144x512xf32, #tpu.memory_space<vmem>>, vector<16x512xf32>
    tpu.vector_store %arg9[%c64, %c0_16], %12 {strides = array<i32>} : memref<144x512xf32, #tpu.memory_space<vmem>>, vector<16x512xf32>,
    %c511_i32 = arith.constant 511 : i32
    %37 = tpu.dynamic_rotate %12 by %c511_i32 dim 1 : vector<16x512xf32>, i32 -> vector<16x512xf32>
    %c5 = arith.constant 5 : index
    %c0_17 = arith.constant 0 : index
    %38 = vector.load %arg7[%c5, %c0_17] : memref<9x512xf32, #tpu.memory_space<vmem>>, vector<1x512xf32>
    %39 = vector.broadcast %38 : vector<1x512xf32> to vector<16x512xf32>
    %40 = arith.mulf %37, %39 : vector<16x512xf32>
    %c80 = arith.constant 80 : index
    %c0_18 = arith.constant 0 : index
    %41 = vector.load %arg9[%c80, %c0_18] : memref<144x512xf32, #tpu.memory_space<vmem>>, vector<16x512xf32>
    tpu.vector_store %arg9[%c80, %c0_18], %40 {strides = array<i32>} : memref<144x512xf32, #tpu.memory_space<vmem>>, vector<16x512xf32>,
    %c497_i32 = arith.constant 497 : i32
    %42 = tpu.dynamic_rotate %12 by %c497_i32 dim 1 : vector<16x512xf32>, i32 -> vector<16x512xf32>
    %c6 = arith.constant 6 : index
    %c0_19 = arith.constant 0 : index
    %43 = vector.load %arg7[%c6, %c0_19] : memref<9x512xf32, #tpu.memory_space<vmem>>, vector<1x512xf32>
    %44 = vector.broadcast %43 : vector<1x512xf32> to vector<16x512xf32>
    %45 = arith.mulf %42, %44 : vector<16x512xf32>
    %c96 = arith.constant 96 : index
    %c0_20 = arith.constant 0 : index
    %46 = vector.load %arg9[%c96, %c0_20] : memref<144x512xf32, #tpu.memory_space<vmem>>, vector<16x512xf32>
    tpu.vector_store %arg9[%c96, %c0_20], %45 {strides = array<i32>} : memref<144x512xf32, #tpu.memory_space<vmem>>, vector<16x512xf32>,
    %c496_i32 = arith.constant 496 : i32
    %47 = tpu.dynamic_rotate %12 by %c496_i32 dim 1 : vector<16x512xf32>, i32 -> vector<16x512xf32>
    %c7 = arith.constant 7 : index
    %c0_21 = arith.constant 0 : index
    %48 = vector.load %arg7[%c7, %c0_21] : memref<9x512xf32, #tpu.memory_space<vmem>>, vector<1x512xf32>
    %49 = vector.broadcast %48 : vector<1x512xf32> to vector<16x512xf32>
    %50 = arith.mulf %47, %49 : vector<16x512xf32>
    %c112 = arith.constant 112 : index
    %c0_22 = arith.constant 0 : index
    %51 = vector.load %arg9[%c112, %c0_22] : memref<144x512xf32, #tpu.memory_space<vmem>>, vector<16x512xf32>
    tpu.vector_store %arg9[%c112, %c0_22], %50 {strides = array<i32>} : memref<144x512xf32, #tpu.memory_space<vmem>>, vector<16x512xf32>,
    %c495_i32 = arith.constant 495 : i32
    %52 = tpu.dynamic_rotate %12 by %c495_i32 dim 1 : vector<16x512xf32>, i32 -> vector<16x512xf32>
    %c8 = arith.constant 8 : index
    %c0_23 = arith.constant 0 : index
    %53 = vector.load %arg7[%c8, %c0_23] : memref<9x512xf32, #tpu.memory_space<vmem>>, vector<1x512xf32>
    %54 = vector.broadcast %53 : vector<1x512xf32> to vector<16x512xf32>
    %55 = arith.mulf %52, %54 : vector<16x512xf32>
    %c128 = arith.constant 128 : index
    %c0_24 = arith.constant 0 : index
    %56 = vector.load %arg9[%c128, %c0_24] : memref<144x512xf32, #tpu.memory_space<vmem>>, vector<16x512xf32>
    tpu.vector_store %arg9[%c128, %c0_24], %55 {strides = array<i32>} : memref<144x512xf32, #tpu.memory_space<vmem>>, vector<16x512xf32>,
    %c0_25 = arith.constant 0 : index
    %c0_26 = arith.constant 0 : index
    %57 = vector.load %arg3[%c0_25, %c0_26] : memref<16x144xf32, #tpu.memory_space<vmem>>, vector<16x144xf32>
    %c0_27 = arith.constant 0 : index
    %c0_28 = arith.constant 0 : index
    %58 = vector.load %arg9[%c0_27, %c0_28] : memref<144x512xf32, #tpu.memory_space<vmem>>, vector<144x512xf32>
    %cst_29 = arith.constant dense<0.000000e+00> : vector<16x512xf32>
    %59 = tpu.matmul %57, %58, %cst_29 {dimension_numbers = #tpu.dot_dimension_numbers<[1], [0], [0], [1], [0, 0, 1, 1], [], []>} : vector<16x144xf32>, vector<144x512xf32>, vector<16x512xf32> -> vector<16x512xf32>
    %60 = vector.broadcast %3 : vector<16x1xf32> to vector<16x512xf32>
    %61 = arith.addf %59, %60 : vector<16x512xf32>
    %62 = arith.addf %61, %15 : vector<16x512xf32>
    %cst_30 = arith.constant 0.000000e+00 : f32
    %63 = vector.broadcast %cst_30 : f32 to vector<16x512xf32>
    %64 = arith.maximumf %62, %63 : vector<16x512xf32>
    %c0_31 = arith.constant 0 : index
    %c0_32 = arith.constant 0 : index
    %65 = vector.load %arg5[%c0_31, %c0_32] : memref<16x2xf32, #tpu.memory_space<vmem>>, vector<16x2xf32>
    %66 = vector.extract_strided_slice %65 {offsets = [0, 0], sizes = [16, 1], strides = [1, 1]} : vector<16x2xf32> to vector<16x1xf32>
    %67 = vector.extract_strided_slice %65 {offsets = [0, 1], sizes = [16, 1], strides = [1, 1]} : vector<16x2xf32> to vector<16x1xf32>
    %c0_33 = arith.constant 0 : index
    %c0_34 = arith.constant 0 : index
    %68 = vector.load %arg6[%c0_33, %c0_34] : memref<1x1xf32, #tpu.memory_space<vmem>>, vector<1x1xf32>
    %69 = vector.extract_strided_slice %64 {offsets = [0, 0], sizes = [16, 256], strides = [1, 1]} : vector<16x512xf32> to vector<16x256xf32>
    %cst_35 = arith.constant dense<0.000000e+00> : vector<16xf32>
    %70 = vector.multi_reduction <add>, %69, %cst_35 [1] : vector<16x256xf32> to vector<16xf32>
    %71 = vector.shape_cast %70 : vector<16xf32> to vector<16x1xf32>
    %cst_36 = arith.constant 2.560000e+02 : f32
    %72 = vector.broadcast %cst_36 : f32 to vector<16x1xf32>
    %73 = arith.divf %71, %72 : vector<16x1xf32>
    %74 = arith.mulf %66, %73 : vector<16x1xf32>
    %cst_37 = arith.constant dense<0.000000e+00> : vector<1xf32>
    %75 = vector.multi_reduction <add>, %74, %cst_37 [0] : vector<16x1xf32> to vector<1xf32>
    %76 = vector.shape_cast %75 : vector<1xf32> to vector<1x1xf32>
    %77 = arith.addf %76, %68 : vector<1x1xf32>
    %cst_38 = arith.constant 0.000000e+00 : f32
    %78 = vector.broadcast %cst_38 : f32 to vector<1x1xf32>
    %79 = arith.maximumf %77, %78 : vector<1x1xf32>
    %80 = vector.broadcast %79 : vector<1x1xf32> to vector<16x1xf32>
    %81 = arith.mulf %67, %80 : vector<16x1xf32>
    %cst_39 = arith.constant dense<0.000000e+00> : vector<16xf32>
    %82 = vector.multi_reduction <add>, %81, %cst_39 [1] : vector<16x1xf32> to vector<16xf32>
    %83 = vector.shape_cast %82 : vector<16xf32> to vector<16x1xf32>
    %84 = arith.addf %83, %5 : vector<16x1xf32>
    %85 = arith.negf %84 : vector<16x1xf32>
    %86 = math.exp %85 : vector<16x1xf32>
    %cst_40 = arith.constant 1.000000e+00 : f32
    %87 = vector.broadcast %cst_40 : f32 to vector<16x1xf32>
    %88 = arith.addf %87, %86 : vector<16x1xf32>
    %89 = arith.divf %87, %88 : vector<16x1xf32>
    %90 = vector.broadcast %89 : vector<16x1xf32> to vector<16x256xf32>
    %91 = arith.mulf %69, %90 : vector<16x256xf32>
    %c0_41 = arith.constant 0 : index
    %c0_42 = arith.constant 0 : index
    %c0_43 = arith.constant 0 : index
    %92 = vector.load %arg8[%c0_41, %c0_42, %c0_43] : memref<2x16x256xf32, #tpu.memory_space<vmem>>, vector<1x16x256xf32>
    %93 = vector.shape_cast %92 : vector<1x16x256xf32> to vector<16x256xf32>
    %94 = vector.shape_cast %91 : vector<16x256xf32> to vector<1x16x256xf32>
    tpu.vector_store %arg8[%c0_41, %c0_42, %c0_43], %94 {strides = array<i32>} : memref<2x16x256xf32, #tpu.memory_space<vmem>>, vector<1x16x256xf32>,
    %95 = vector.extract_strided_slice %64 {offsets = [0, 256], sizes = [16, 256], strides = [1, 1]} : vector<16x512xf32> to vector<16x256xf32>
    %cst_44 = arith.constant dense<0.000000e+00> : vector<16xf32>
    %96 = vector.multi_reduction <add>, %95, %cst_44 [1] : vector<16x256xf32> to vector<16xf32>
    %97 = vector.shape_cast %96 : vector<16xf32> to vector<16x1xf32>
    %cst_45 = arith.constant 2.560000e+02 : f32
    %98 = vector.broadcast %cst_45 : f32 to vector<16x1xf32>
    %99 = arith.divf %97, %98 : vector<16x1xf32>
    %100 = arith.mulf %66, %99 : vector<16x1xf32>
    %cst_46 = arith.constant dense<0.000000e+00> : vector<1xf32>
    %101 = vector.multi_reduction <add>, %100, %cst_46 [0] : vector<16x1xf32> to vector<1xf32>
    %102 = vector.shape_cast %101 : vector<1xf32> to vector<1x1xf32>
    %103 = arith.addf %102, %68 : vector<1x1xf32>
    %cst_47 = arith.constant 0.000000e+00 : f32
    %104 = vector.broadcast %cst_47 : f32 to vector<1x1xf32>
    %105 = arith.maximumf %103, %104 : vector<1x1xf32>
    %106 = vector.broadcast %105 : vector<1x1xf32> to vector<16x1xf32>
    %107 = arith.mulf %67, %106 : vector<16x1xf32>
    %cst_48 = arith.constant dense<0.000000e+00> : vector<16xf32>
    %108 = vector.multi_reduction <add>, %107, %cst_48 [1] : vector<16x1xf32> to vector<16xf32>
    %109 = vector.shape_cast %108 : vector<16xf32> to vector<16x1xf32>
    %110 = arith.addf %109, %5 : vector<16x1xf32>
    %111 = arith.negf %110 : vector<16x1xf32>
    %112 = math.exp %111 : vector<16x1xf32>
    %cst_49 = arith.constant 1.000000e+00 : f32
    %113 = vector.broadcast %cst_49 : f32 to vector<16x1xf32>
    %114 = arith.addf %113, %112 : vector<16x1xf32>
    %115 = arith.divf %113, %114 : vector<16x1xf32>
    %116 = vector.broadcast %115 : vector<16x1xf32> to vector<16x256xf32>
    %117 = arith.mulf %95, %116 : vector<16x256xf32>
    %c1_50 = arith.constant 1 : index
    %c0_51 = arith.constant 0 : index
    %c0_52 = arith.constant 0 : index
    %118 = vector.load %arg8[%c1_50, %c0_51, %c0_52] : memref<2x16x256xf32, #tpu.memory_space<vmem>>, vector<1x16x256xf32>
    %119 = vector.shape_cast %118 : vector<1x16x256xf32> to vector<16x256xf32>
    %120 = vector.shape_cast %117 : vector<16x256xf32> to vector<1x16x256xf32>
    tpu.vector_store %arg8[%c1_50, %c0_51, %c0_52], %120 {strides = array<i32>} : memref<2x16x256xf32, #tpu.memory_space<vmem>>, vector<1x16x256xf32>,
    return
  }
  func.func @transform_0(%arg0: i32) -> (i32, i32) {
    %c0_i32 = arith.constant 0 : i32
    %c0_i32_0 = arith.constant 0 : i32
    return %c0_i32, %arg0 : i32, i32
  }
  func.func @transform_1(%arg0: i32) -> (i32, i32) {
    %c0_i32 = arith.constant 0 : i32
    %c0_i32_0 = arith.constant 0 : i32
    %c0_i32_1 = arith.constant 0 : i32
    return %c0_i32, %c0_i32_0 : i32, i32
  }
  func.func @transform_2(%arg0: i32) -> (i32, i32) {
    %c0_i32 = arith.constant 0 : i32
    %c0_i32_0 = arith.constant 0 : i32
    %c0_i32_1 = arith.constant 0 : i32
    return %c0_i32, %c0_i32_0 : i32, i32
  }
  func.func @transform_3(%arg0: i32) -> (i32, i32) {
    %c0_i32 = arith.constant 0 : i32
    %c0_i32_0 = arith.constant 0 : i32
    %c0_i32_1 = arith.constant 0 : i32
    return %c0_i32, %c0_i32_0 : i32, i32
  }
  func.func @transform_4(%arg0: i32) -> (i32, i32) {
    %c0_i32 = arith.constant 0 : i32
    %c0_i32_0 = arith.constant 0 : i32
    %c0_i32_1 = arith.constant 0 : i32
    return %c0_i32, %c0_i32_0 : i32, i32
  }
  func.func @transform_5(%arg0: i32) -> (i32, i32) {
    %c0_i32 = arith.constant 0 : i32
    %c0_i32_0 = arith.constant 0 : i32
    %c0_i32_1 = arith.constant 0 : i32
    return %c0_i32, %c0_i32_0 : i32, i32
  }
  func.func @transform_6(%arg0: i32) -> (i32, i32) {
    %c0_i32 = arith.constant 0 : i32
    %c0_i32_0 = arith.constant 0 : i32
    %c0_i32_1 = arith.constant 0 : i32
    return %c0_i32, %c0_i32_0 : i32, i32
  }
  func.func @transform_7(%arg0: i32) -> (i32, i32, i32) {
    %c0_i32 = arith.constant 0 : i32
    %c0_i32_0 = arith.constant 0 : i32
    %c0_i32_1 = arith.constant 0 : i32
    return %arg0, %c0_i32, %c0_i32_0 : i32, i32, i32
  }
}

</mosaic_0001>

<llo_original>
// kernel: tpu_custom_call.1
$region0: #{tpu_custom_call.1}
  #allocation0 [shape = 'u32[]', space=smem, size = 0x4, offset = 0x4, fixed_abs, tag = 'smem constant byte address 0x4 - core index']
  #allocation1 [shape = 'u32[144,128]{1,0:T(1,128)}', space=vmem, size = 0x12000, scoped, tag = 'internal scratch']
  #allocation2 [shape = 'f32[144,512]{1,0:T(8,128)}', space=vmem, size = 0x48000, scoped, tag = 'scratch operand']
  #allocation3 [shape = 'f32[1,1]{1,0:T(1,128)S(1)}', space=vmem, size = 0x200, scoped, tag = 'scoped memory for tpu_custom_call.1']
  %s0 = inlined_call_operand.vmem [shape: f32[4,512], index: 0, kind: input, shape index: {}]
  %s1 = inlined_call_operand.vmem [shape: f32[32,4], index: 1, kind: input, shape index: {}]
  %s2 = inlined_call_operand.hbm [shape: f32[16,144], index: 2, kind: input, shape index: {}]
  %s3 = inlined_call_operand.vmem [shape: f32[16,4], index: 3, kind: input, shape index: {}]
  %s4 = inlined_call_operand.vmem [shape: f32[16,2], index: 4, kind: input, shape index: {}]
  %s5 = inlined_call_operand.<no memory space> [shape: f32[1,1], index: 5, kind: input, shape index: {}]
  %s6 = inlined_call_operand.vmem [shape: f32[9,512], index: 6, kind: input, shape index: {}]
  %s7 = inlined_call_operand.hbm [shape: f32[2,16,256], index: 7, kind: output, shape index: {}]
  %s8 = sld [smem:[#allocation0]]
  $region42: #{tpu_custom_call.1} parent=0
    _
  %s10 = ssub.s32 1, %s8
  %s11 = scalar_select 0, %s10, %s8
  %v12 = vstv %s5
  %13 = vst [vmem:[#allocation3] sm:$0x1] %v12
  $region1: #{tpu_custom_call.1} parent=0
    #allocation4 [shape = 'u8[16384]{0}', space=vmem, size = 0x4000, scoped, tag = 'input window, operand 2, single buffered']
    #allocation5 [shape = 's32[1]{0}', space=sflag, size = 0x4, scoped, tag = 'scoped memory for tpu_custom_call.1']
    #allocation6 [shape = 's32[1]{0}', space=sflag, size = 0x4, scoped, tag = 'scoped memory for tpu_custom_call.1']
    #allocation7 [shape = 'u8[32768]{0}', space=vmem, size = 0x8000, scoped, tag = 'output window, operand 0, single buffered']
    %14 = vsyncpa [#allocation5], 0
    %15 = vsyncpa [#allocation6], 0
    // Predicated region
    $region2: #{tpu_custom_call.1} parent=1 // pred_check
      _
    $region3: #{tpu_custom_call.1} parent=1 // pred_check_branch
      %17 = sbr.rel (0) target = $region5
    $region4: #{tpu_custom_call.1} parent=1 // pred_region
      _
    $region5: #{tpu_custom_call.1} parent=1 // pred_fallthru
      _
    // Predicated region
    $region6: #{tpu_custom_call.1} parent=1 // pred_check
      _
    $region7: #{tpu_custom_call.1} parent=1 // pred_check_branch
      %19 = sbr.rel (0) target = $region9
    $region8: #{tpu_custom_call.1} parent=1 // pred_region
      _
    $region9: #{tpu_custom_call.1} parent=1 // pred_fallthru
      _
    // Predicated region
    $region10: #{tpu_custom_call.1} parent=1 // pred_check
      _
    $region11: #{tpu_custom_call.1} parent=1 // pred_check_branch
      %21 = sbr.rel (0) target = $region13
    $region12: #{tpu_custom_call.1} parent=1 // pred_region
      %s23 = ssub.s32 512, 512
      %24 = vsyncadd [#allocation5], %s23
      %s25 = sshll.u32 [#allocation4], 4
      %s26 = int_to_ptr.vmem [resolvable:$true] %s25
      %31 = dma.hbm_to_vmem [thread:$0]  %s2, 512, %s26, [#allocation5], 256, 256, 16
    $region13: #{tpu_custom_call.1} parent=1 // pred_fallthru
      _
    // Predicated region
    $region14: #{tpu_custom_call.1} parent=1 // pred_check
      _
    $region15: #{tpu_custom_call.1} parent=1 // pred_check_branch
      %33 = sbr.rel (0) target = $region17
    $region16: #{tpu_custom_call.1} parent=1 // pred_region
      _
    $region17: #{tpu_custom_call.1} parent=1 // pred_fallthru
      _
    // Predicated region
    $region18: #{tpu_custom_call.1} parent=1 // pred_check
      _
    $region19: #{tpu_custom_call.1} parent=1 // pred_check_branch
      %35 = sbr.rel (0) target = $region21
    $region20: #{tpu_custom_call.1} parent=1 // pred_region
      _
    $region21: #{tpu_custom_call.1} parent=1 // pred_fallthru
      _
    // Predicated region
    $region22: #{tpu_custom_call.1} parent=1 // pred_check
      _
    $region23: #{tpu_custom_call.1} parent=1 // pred_check_branch
      %37 = sbr.rel (0) target = $region25
    $region24: #{tpu_custom_call.1} parent=1 // pred_region
      _
    $region25: #{tpu_custom_call.1} parent=1 // pred_fallthru
      _
    // Predicated region
    $region26: #{tpu_custom_call.1} parent=1 // pred_check
      _
    $region27: #{tpu_custom_call.1} parent=1 // pred_check_branch
      %39 = sbr.rel (0) target = $region29
    $region28: #{tpu_custom_call.1} parent=1 // pred_region
      _
    $region29: #{tpu_custom_call.1} parent=1 // pred_fallthru
      _
    // Predicated region
    $region30: #{tpu_custom_call.1} parent=1 // pred_check
      _
    $region31: #{tpu_custom_call.1} parent=1 // pred_check_branch
      %41 = sbr.rel (0) target = $region33
    $region32: #{tpu_custom_call.1} parent=1 // pred_region
      %42 = dma.done [#allocation5], 512
    $region33: #{tpu_custom_call.1} parent=1 // pred_fallthru
      _
    %v43 = vld [vmem:[%s0] sm:$0xff]
    %v44 = vld [vmem:[%s0 + $0x8] sm:$0xff]
    %v45 = vld [vmem:[%s3] sm:$0xff]
    %v46 = vld [vmem:[%s3 + $0x8] sm:$0xff]
    %v47 = vld [vmem:[%s1] sm:$0xff]
    %v48 = vld [vmem:[%s1 + $0x8] sm:$0xff]
    %v49 = vld [vmem:[%s1 + $0x10] sm:$0xff]
    %v50 = vld [vmem:[%s1 + $0x18] sm:$0xff]
    %v53 = vcombine.high %v43, %v43
    %v54 = vcombine.high %v44, %v44
    %vm55 = vcmask 31744
    %v57 = vsel %vm55, %v47, 0
    %v60 = vsel %vm55, %v48, 0
    %v63 = vsel %vm55, %v49, 0
    %v66 = vsel %vm55, %v50, 0
    %vm68 = vcmask 1043456
    %v69 = vsel %vm68, %v43, 0
    %v71 = vsel %vm68, %v53, 0
    %v73 = vsel %vm68, %v44, 0
    %v75 = vsel %vm68, %v54, 0
    %77 = vmatprep.subr.mxu0 0.0
    %78 = vmatpush1.msra.mxu0 0.0
    %79 = vmatprep.subr.mxu0 0.0
    %80 = vmatpush1.msra.mxu0 0.0
    %81 = vmatprep.subr.mxu0 0.0
    %82 = vmatpush1.msra.mxu0 0.0
    %83 = vmatprep.subr.mxu0 0.0
    %84 = vmatpush1.msra.mxu0 0.0
    %85 = vmatprep.subr.mxu0 0.0
    %86 = vmatpush1.msra.mxu0 0.0
    %87 = vmatprep.subr.mxu0 0.0
    %88 = vmatpush1.msra.mxu0 0.0
    %89 = vmatprep.subr.mxu0 0.0
    %90 = vmatpush1.msra.mxu0 0.0
    %91 = vmatprep.subr.mxu0 0.0
    %92 = vmatpush1.msra.mxu0 0.0
    %93 = vmatprep.subr.mxu0 0.0
    %94 = vmatpush1.msra.mxu0 0.0
    %95 = vmatprep.subr.mxu0 0.0
    %96 = vmatpush1.msra.mxu0 0.0
    %97 = vmatprep.subr.mxu0 0.0
    %98 = vmatpush1.msra.mxu0 0.0
    %99 = vmatprep.subr.mxu0 0.0
    %100 = vmatpush1.msra.mxu0 0.0
    %101 = vmatprep.subr.mxu0 0.0
    %102 = vmatpush1.msra.mxu0 0.0
    %103 = vmatprep.subr.mxu0 0.0
    %104 = vmatpush1.msra.mxu0 0.0
    %105 = vmatprep.subr.mxu0 0.0
    %106 = vmatpush1.msra.mxu0 0.0
    %107 = vmatprep.subr.mxu0 %v71
    %108 = vmatpush1.msra.mxu0 %v69
    %109 = vmatprep.subr.mxu0 0.0
    %110 = vmatpush2.msra.mxu0 0.0
    %111 = vmatprep.subr.mxu0 0.0
    %112 = vmatpush2.msra.mxu0 0.0
    %113 = vmatprep.subr.mxu0 0.0
    %114 = vmatpush2.msra.mxu0 0.0
    %115 = vmatprep.subr.mxu0 0.0
    %116 = vmatpush2.msra.mxu0 0.0
    %117 = vmatprep.subr.mxu0 0.0
    %118 = vmatpush2.msra.mxu0 0.0
    %119 = vmatprep.subr.mxu0 0.0
    %120 = vmatpush2.msra.mxu0 0.0
    %121 = vmatprep.subr.mxu0 0.0
    %122 = vmatpush2.msra.mxu0 0.0
    %123 = vmatprep.subr.mxu0 0.0
    %124 = vmatpush2.msra.mxu0 0.0
    %125 = vmatprep.subr.mxu0 0.0
    %126 = vmatpush2.msra.mxu0 0.0
    %127 = vmatprep.subr.mxu0 0.0
    %128 = vmatpush2.msra.mxu0 0.0
    %129 = vmatprep.subr.mxu0 0.0
    %130 = vmatpush2.msra.mxu0 0.0
    %131 = vmatprep.subr.mxu0 0.0
    %132 = vmatpush2.msra.mxu0 0.0
    %133 = vmatprep.subr.mxu0 0.0
    %134 = vmatpush2.msra.mxu0 0.0
    %135 = vmatprep.subr.mxu0 0.0
    %136 = vmatpush2.msra.mxu0 0.0
    %137 = vmatprep.subr.mxu0 0.0
    %138 = vmatpush2.msra.mxu0 0.0
    %139 = vmatprep.subr.mxu0 0.0
    %140 = vmatpush2.msra.mxu0 0.0
    %141 = vmatprep.mubr.f32.mxu0 0.0
    %142 = vmatmul.mubr.f32.gmra.mxu0 %v57
    %v143 = vpop.f32.mrf.mxu0
    %v144 = vadd.f32 0.0, %v143
    %v145 = vpop.f32.mrf.mxu0
    %v146 = vadd.f32 0.0, %v145
    %147 = vmatprep.mubr.f32.mxu0 0.0
    %148 = vmatmul.mubr.f32.gmra.mxu0 %v60
    %v149 = vpop.f32.mrf.mxu0
    %v150 = vadd.f32 0.0, %v149
    %v151 = vpop.f32.mrf.mxu0
    %v152 = vadd.f32 0.0, %v151
    %153 = vmatprep.mubr.f32.mxu0 0.0
    %154 = vmatmul.mubr.f32.gmra.mxu0 %v63
    %v155 = vpop.f32.mrf.mxu0
    %v156 = vadd.f32 0.0, %v155
    %v157 = vpop.f32.mrf.mxu0
    %v158 = vadd.f32 0.0, %v157
    %159 = vmatprep.mubr.f32.mxu0 0.0
    %160 = vmatmul.mubr.f32.gmra.mxu0 %v66
    %v161 = vpop.f32.mrf.mxu0
    %v162 = vadd.f32 0.0, %v161
    %v163 = vpop.f32.mrf.mxu0
    %v164 = vadd.f32 0.0, %v163
    %165 = vdwg.mxu0
    %166 = vmatprep.subr.mxu0 0.0
    %167 = vmatpush1.msra.mxu0 0.0
    %168 = vmatprep.subr.mxu0 0.0
    %169 = vmatpush1.msra.mxu0 0.0
    %170 = vmatprep.subr.mxu0 0.0
    %171 = vmatpush1.msra.mxu0 0.0
    %172 = vmatprep.subr.mxu0 0.0
    %173 = vmatpush1.msra.mxu0 0.0
    %174 = vmatprep.subr.mxu0 0.0
    %175 = vmatpush1.msra.mxu0 0.0
    %176 = vmatprep.subr.mxu0 0.0
    %177 = vmatpush1.msra.mxu0 0.0
    %178 = vmatprep.subr.mxu0 0.0
    %179 = vmatpush1.msra.mxu0 0.0
    %180 = vmatprep.subr.mxu0 0.0
    %181 = vmatpush1.msra.mxu0 0.0
    %182 = vmatprep.subr.mxu0 0.0
    %183 = vmatpush1.msra.mxu0 0.0
    %184 = vmatprep.subr.mxu0 0.0
    %185 = vmatpush1.msra.mxu0 0.0
    %186 = vmatprep.subr.mxu0 0.0
    %187 = vmatpush1.msra.mxu0 0.0
    %188 = vmatprep.subr.mxu0 0.0
    %189 = vmatpush1.msra.mxu0 0.0
    %190 = vmatprep.subr.mxu0 0.0
    %191 = vmatpush1.msra.mxu0 0.0
    %192 = vmatprep.subr.mxu0 0.0
    %193 = vmatpush1.msra.mxu0 0.0
    %194 = vmatprep.subr.mxu0 0.0
    %195 = vmatpush1.msra.mxu0 0.0
    %196 = vmatprep.subr.mxu0 %v75
    %197 = vmatpush1.msra.mxu0 %v73
    %198 = vmatprep.subr.mxu0 0.0
    %199 = vmatpush2.msra.mxu0 0.0
    %200 = vmatprep.subr.mxu0 0.0
    %201 = vmatpush2.msra.mxu0 0.0
    %202 = vmatprep.subr.mxu0 0.0
    %203 = vmatpush2.msra.mxu0 0.0
    %204 = vmatprep.subr.mxu0 0.0
    %205 = vmatpush2.msra.mxu0 0.0
    %206 = vmatprep.subr.mxu0 0.0
    %207 = vmatpush2.msra.mxu0 0.0
    %208 = vmatprep.subr.mxu0 0.0
    %209 = vmatpush2.msra.mxu0 0.0
    %210 = vmatprep.subr.mxu0 0.0
    %211 = vmatpush2.msra.mxu0 0.0
    %212 = vmatprep.subr.mxu0 0.0
    %213 = vmatpush2.msra.mxu0 0.0
    %214 = vmatprep.subr.mxu0 0.0
    %215 = vmatpush2.msra.mxu0 0.0
    %216 = vmatprep.subr.mxu0 0.0
    %217 = vmatpush2.msra.mxu0 0.0
    %218 = vmatprep.subr.mxu0 0.0
    %219 = vmatpush2.msra.mxu0 0.0
    %220 = vmatprep.subr.mxu0 0.0
    %221 = vmatpush2.msra.mxu0 0.0
    %222 = vmatprep.subr.mxu0 0.0
    %223 = vmatpush2.msra.mxu0 0.0
    %224 = vmatprep.subr.mxu0 0.0
    %225 = vmatpush2.msra.mxu0 0.0
    %226 = vmatprep.subr.mxu0 0.0
    %227 = vmatpush2.msra.mxu0 0.0
    %228 = vmatprep.subr.mxu0 0.0
    %229 = vmatpush2.msra.mxu0 0.0
    %230 = vmatprep.mubr.f32.mxu0 0.0
    %231 = vmatmul.mubr.f32.gmra.mxu0 %v57
    %v232 = vpop.f32.mrf.mxu0
    %v233 = vadd.f32 0.0, %v232
    %v234 = vpop.f32.mrf.mxu0
    %v235 = vadd.f32 0.0, %v234
    %236 = vmatprep.mubr.f32.mxu0 0.0
    %237 = vmatmul.mubr.f32.gmra.mxu0 %v60
    %v238 = vpop.f32.mrf.mxu0
    %v239 = vadd.f32 0.0, %v238
    %v240 = vpop.f32.mrf.mxu0
    %v241 = vadd.f32 0.0, %v240
    %242 = vmatprep.mubr.f32.mxu0 0.0
    %243 = vmatmul.mubr.f32.gmra.mxu0 %v63
    %v244 = vpop.f32.mrf.mxu0
    %v245 = vadd.f32 0.0, %v244
    %v246 = vpop.f32.mrf.mxu0
    %v247 = vadd.f32 0.0, %v246
    %248 = vmatprep.mubr.f32.mxu0 0.0
    %249 = vmatmul.mubr.f32.gmra.mxu0 %v66
    %v250 = vpop.f32.mrf.mxu0
    %v251 = vadd.f32 0.0, %v250
    %v252 = vpop.f32.mrf.mxu0
    %v253 = vadd.f32 0.0, %v252
    %254 = vdwg.mxu0
    %256 = vset.pattern.permute.xlu0 0
    %257 = vperm.xlu0 %256, %v45
    %v258 = vpop.permute.xlu0 %257
    %261 = vset.pattern.permute.xlu0 0
    %262 = vperm.xlu0 %261, %v46
    %v263 = vpop.permute.xlu0 %262
    %v265 = vadd.f32 %v144, %v258
    %v266 = vadd.f32 %v146, %v258
    %v267 = vadd.f32 %v233, %v258
    %v268 = vadd.f32 %v235, %v258
    %v269 = vadd.f32 %v150, %v263
    %v270 = vadd.f32 %v152, %v263
    %v271 = vadd.f32 %v239, %v263
    %v272 = vadd.f32 %v241, %v263
    %v273 = vmax.f32 %v265, 0.0
    %v274 = vmax.f32 %v266, 0.0
    %v275 = vmax.f32 %v267, 0.0
    %v276 = vmax.f32 %v268, 0.0
    %v277 = vmax.f32 %v269, 0.0
    %v278 = vmax.f32 %v270, 0.0
    %v279 = vmax.f32 %v271, 0.0
    %v280 = vmax.f32 %v272, 0.0
    %281 = vset.pattern.permute.xlu0 2
    %282 = vperm.xlu0 %281, %v45
    %v283 = vpop.permute.xlu0 %282
    %285 = vset.pattern.permute.xlu0 2
    %286 = vperm.xlu0 %285, %v46
    %v287 = vpop.permute.xlu0 %286
    %v289 = vadd.f32 %v156, %v283
    %v290 = vadd.f32 %v158, %v283
    %v291 = vadd.f32 %v245, %v283
    %v292 = vadd.f32 %v247, %v283
    %v293 = vadd.f32 %v162, %v287
    %v294 = vadd.f32 %v164, %v287
    %v295 = vadd.f32 %v251, %v287
    %v296 = vadd.f32 %v253, %v287
    %297 = vrot.lane.b32.xlu0 %v273, 17
    %v298 = vpop.permute.xlu0 %297
    %299 = vrot.lane.b32.xlu0 %v277, 17
    %v300 = vpop.permute.xlu0 %299
    %301 = vrot.lane.b32.xlu0 %v274, 17
    %v302 = vpop.permute.xlu0 %301
    %303 = vrot.lane.b32.xlu0 %v278, 17
    %v304 = vpop.permute.xlu0 %303
    %305 = vrot.lane.b32.xlu0 %v275, 17
    %v306 = vpop.permute.xlu0 %305
    %307 = vrot.lane.b32.xlu0 %v279, 17
    %v308 = vpop.permute.xlu0 %307
    %309 = vrot.lane.b32.xlu0 %v276, 17
    %v310 = vpop.permute.xlu0 %309
    %311 = vrot.lane.b32.xlu0 %v280, 17
    %v312 = vpop.permute.xlu0 %311
    %v313 = vlaneseq
    %v314 = vand.u32 %v313, 127
    %vm315 = vcmp.lt.s32.totalorder %v314, 17
    %v316 = vsel %vm315, %v306, %v310
    %v317 = vsel %vm315, %v308, %v312
    %v318 = vsel %vm315, %v302, %v306
    %v319 = vsel %vm315, %v304, %v308
    %v320 = vsel %vm315, %v298, %v302
    %v321 = vsel %vm315, %v300, %v304
    %v322 = vsel %vm315, %v310, %v298
    %v323 = vsel %vm315, %v312, %v300
    %v324 = vld [vmem:[%s6] ss:$8 sm:$0xf]
    %v326 = vlaneseq
    %v327 = vshrl.u32 %v326, 7
    %v328 = vsub.s32 0, %v327
    %v329 = vrot.slane %v324, %v328
    %v330 = vlaneseq
    %v331 = vshrl.u32 %v330, 7
    %v332 = vsub.s32 1, %v331
    %v333 = vrot.slane %v324, %v332
    %v334 = vlaneseq
    %v335 = vshrl.u32 %v334, 7
    %v336 = vsub.s32 2, %v335
    %v337 = vrot.slane %v324, %v336
    %v338 = vlaneseq
    %v339 = vshrl.u32 %v338, 7
    %v340 = vsub.s32 3, %v339
    %v341 = vrot.slane %v324, %v340
    %v346 = vmul.f32 %v322, %v329
    %v347 = vmul.f32 %v320, %v333
    %v348 = vmul.f32 %v318, %v337
    %v349 = vmul.f32 %v316, %v341
    %v350 = vmul.f32 %v323, %v329
    %v351 = vmul.f32 %v321, %v333
    %v352 = vmul.f32 %v319, %v337
    %v353 = vmul.f32 %v317, %v341
    %354 = vst [vmem:[#allocation2] sm:$0xff] %v346
    %355 = vst [vmem:[#allocation2 + $0x8] sm:$0xff] %v347
    %356 = vst [vmem:[#allocation2 + $0x10] sm:$0xff] %v348
    %357 = vst [vmem:[#allocation2 + $0x18] sm:$0xff] %v349
    %358 = vst [vmem:[#allocation2 + $0x20] sm:$0xff] %v350
    %359 = vst [vmem:[#allocation2 + $0x28] sm:$0xff] %v351
    %360 = vst [vmem:[#allocation2 + $0x30] sm:$0xff] %v352
    %361 = vst [vmem:[#allocation2 + $0x38] sm:$0xff] %v353
    %362 = vrot.lane.b32.xlu0 %v273, 16
    %v363 = vpop.permute.xlu0 %362
    %364 = vrot.lane.b32.xlu0 %v277, 16
    %v365 = vpop.permute.xlu0 %364
    %366 = vrot.lane.b32.xlu0 %v274, 16
    %v367 = vpop.permute.xlu0 %366
    %368 = vrot.lane.b32.xlu0 %v278, 16
    %v369 = vpop.permute.xlu0 %368
    %370 = vrot.lane.b32.xlu0 %v275, 16
    %v371 = vpop.permute.xlu0 %370
    %372 = vrot.lane.b32.xlu0 %v279, 16
    %v373 = vpop.permute.xlu0 %372
    %374 = vrot.lane.b32.xlu0 %v276, 16
    %v375 = vpop.permute.xlu0 %374
    %376 = vrot.lane.b32.xlu0 %v280, 16
    %v377 = vpop.permute.xlu0 %376
    %vm378 = vcmp.lt.s32.totalorder %v314, 16
    %v379 = vsel %vm378, %v371, %v375
    %v380 = vsel %vm378, %v373, %v377
    %v381 = vsel %vm378, %v367, %v371
    %v382 = vsel %vm378, %v369, %v373
    %v383 = vsel %vm378, %v363, %v367
    %v384 = vsel %vm378, %v365, %v369
    %v385 = vsel %vm378, %v375, %v363
    %v386 = vsel %vm378, %v377, %v365
    %s387 = scalar_lea.vmem %s6, 1
    %v388 = vld [vmem:[%s387] ss:$8 sm:$0xf]
    %v390 = vlaneseq
    %v391 = vshrl.u32 %v390, 7
    %v392 = vsub.s32 0, %v391
    %v393 = vrot.slane %v388, %v392
    %v394 = vlaneseq
    %v395 = vshrl.u32 %v394, 7
    %v396 = vsub.s32 1, %v395
    %v397 = vrot.slane %v388, %v396
    %v398 = vlaneseq
    %v399 = vshrl.u32 %v398, 7
    %v400 = vsub.s32 2, %v399
    %v401 = vrot.slane %v388, %v400
    %v402 = vlaneseq
    %v403 = vshrl.u32 %v402, 7
    %v404 = vsub.s32 3, %v403
    %v405 = vrot.slane %v388, %v404
    %v410 = vmul.f32 %v385, %v393
    %v411 = vmul.f32 %v383, %v397
    %v412 = vmul.f32 %v381, %v401
    %v413 = vmul.f32 %v379, %v405
    %v414 = vmul.f32 %v386, %v393
    %v415 = vmul.f32 %v384, %v397
    %v416 = vmul.f32 %v382, %v401
    %v417 = vmul.f32 %v380, %v405
    %418 = vst [vmem:[#allocation2 + $0x40] sm:$0xff] %v410
    %419 = vst [vmem:[#allocation2 + $0x48] sm:$0xff] %v411
    %420 = vst [vmem:[#allocation2 + $0x50] sm:$0xff] %v412
    %421 = vst [vmem:[#allocation2 + $0x58] sm:$0xff] %v413
    %422 = vst [vmem:[#allocation2 + $0x60] sm:$0xff] %v414
    %423 = vst [vmem:[#allocation2 + $0x68] sm:$0xff] %v415
    %424 = vst [vmem:[#allocation2 + $0x70] sm:$0xff] %v416
    %425 = vst [vmem:[#allocation2 + $0x78] sm:$0xff] %v417
    %426 = vrot.lane.b32.xlu0 %v273, 15
    %v427 = vpop.permute.xlu0 %426
    %428 = vrot.lane.b32.xlu0 %v277, 15
    %v429 = vpop.permute.xlu0 %428
    %430 = vrot.lane.b32.xlu0 %v274, 15
    %v431 = vpop.permute.xlu0 %430
    %432 = vrot.lane.b32.xlu0 %v278, 15
    %v433 = vpop.permute.xlu0 %432
    %434 = vrot.lane.b32.xlu0 %v275, 15
    %v435 = vpop.permute.xlu0 %434
    %436 = vrot.lane.b32.xlu0 %v279, 15
    %v437 = vpop.permute.xlu0 %436
    %438 = vrot.lane.b32.xlu0 %v276, 15
    %v439 = vpop.permute.xlu0 %438
    %440 = vrot.lane.b32.xlu0 %v280, 15
    %v441 = vpop.permute.xlu0 %440
    %vm442 = vcmp.lt.s32.totalorder %v314, 15
    %v443 = vsel %vm442, %v435, %v439
    %v444 = vsel %vm442, %v437, %v441
    %v445 = vsel %vm442, %v431, %v435
    %v446 = vsel %vm442, %v433, %v437
    %v447 = vsel %vm442, %v427, %v431
    %v448 = vsel %vm442, %v429, %v433
    %v449 = vsel %vm442, %v439, %v427
    %v450 = vsel %vm442, %v441, %v429
    %s451 = scalar_lea.vmem %s6, 2
    %v452 = vld [vmem:[%s451] ss:$8 sm:$0xf]
    %v454 = vlaneseq
    %v455 = vshrl.u32 %v454, 7
    %v456 = vsub.s32 0, %v455
    %v457 = vrot.slane %v452, %v456
    %v458 = vlaneseq
    %v459 = vshrl.u32 %v458, 7
    %v460 = vsub.s32 1, %v459
    %v461 = vrot.slane %v452, %v460
    %v462 = vlaneseq
    %v463 = vshrl.u32 %v462, 7
    %v464 = vsub.s32 2, %v463
    %v465 = vrot.slane %v452, %v464
    %v466 = vlaneseq
    %v467 = vshrl.u32 %v466, 7
    %v468 = vsub.s32 3, %v467
    %v469 = vrot.slane %v452, %v468
    %v474 = vmul.f32 %v449, %v457
    %v475 = vmul.f32 %v447, %v461
    %v476 = vmul.f32 %v445, %v465
    %v477 = vmul.f32 %v443, %v469
    %v478 = vmul.f32 %v450, %v457
    %v479 = vmul.f32 %v448, %v461
    %v480 = vmul.f32 %v446, %v465
    %v481 = vmul.f32 %v444, %v469
    %482 = vst [vmem:[#allocation2 + $0x80] sm:$0xff] %v474
    %483 = vst [vmem:[#allocation2 + $0x88] sm:$0xff] %v475
    %484 = vst [vmem:[#allocation2 + $0x90] sm:$0xff] %v476
    %485 = vst [vmem:[#allocation2 + $0x98] sm:$0xff] %v477
    %486 = vst [vmem:[#allocation2 + $0xa0] sm:$0xff] %v478
    %487 = vst [vmem:[#allocation2 + $0xa8] sm:$0xff] %v479
    %488 = vst [vmem:[#allocation2 + $0xb0] sm:$0xff] %v480
    %489 = vst [vmem:[#allocation2 + $0xb8] sm:$0xff] %v481
    %490 = vrot.lane.b32.xlu0 %v273, 1
    %v491 = vpop.permute.xlu0 %490
    %492 = vrot.lane.b32.xlu0 %v277, 1
    %v493 = vpop.permute.xlu0 %492
    %494 = vrot.lane.b32.xlu0 %v274, 1
    %v495 = vpop.permute.xlu0 %494
    %496 = vrot.lane.b32.xlu0 %v278, 1
    %v497 = vpop.permute.xlu0 %496
    %498 = vrot.lane.b32.xlu0 %v275, 1
    %v499 = vpop.permute.xlu0 %498
    %500 = vrot.lane.b32.xlu0 %v279, 1
    %v501 = vpop.permute.xlu0 %500
    %502 = vrot.lane.b32.xlu0 %v276, 1
    %v503 = vpop.permute.xlu0 %502
    %504 = vrot.lane.b32.xlu0 %v280, 1
    %v505 = vpop.permute.xlu0 %504
    %vm506 = vcmp.lt.s32.totalorder %v314, 1
    %v507 = vsel %vm506, %v499, %v503
    %v508 = vsel %vm506, %v501, %v505
    %v509 = vsel %vm506, %v495, %v499
    %v510 = vsel %vm506, %v497, %v501
    %v511 = vsel %vm506, %v491, %v495
    %v512 = vsel %vm506, %v493, %v497
    %v513 = vsel %vm506, %v503, %v491
    %v514 = vsel %vm506, %v505, %v493
    %s515 = scalar_lea.vmem %s6, 3
    %v516 = vld [vmem:[%s515] ss:$8 sm:$0xf]
    %v518 = vlaneseq
    %v519 = vshrl.u32 %v518, 7
    %v520 = vsub.s32 0, %v519
    %v521 = vrot.slane %v516, %v520
    %v522 = vlaneseq
    %v523 = vshrl.u32 %v522, 7
    %v524 = vsub.s32 1, %v523
    %v525 = vrot.slane %v516, %v524
    %v526 = vlaneseq
    %v527 = vshrl.u32 %v526, 7
    %v528 = vsub.s32 2, %v527
    %v529 = vrot.slane %v516, %v528
    %v530 = vlaneseq
    %v531 = vshrl.u32 %v530, 7
    %v532 = vsub.s32 3, %v531
    %v533 = vrot.slane %v516, %v532
    %v538 = vmul.f32 %v513, %v521
    %v539 = vmul.f32 %v511, %v525
    %v540 = vmul.f32 %v509, %v529
    %v541 = vmul.f32 %v507, %v533
    %v542 = vmul.f32 %v514, %v521
    %v543 = vmul.f32 %v512, %v525
    %v544 = vmul.f32 %v510, %v529
    %v545 = vmul.f32 %v508, %v533
    %546 = vst [vmem:[#allocation2 + $0xc0] sm:$0xff] %v538
    %547 = vst [vmem:[#allocation2 + $0xc8] sm:$0xff] %v539
    %548 = vst [vmem:[#allocation2 + $0xd0] sm:$0xff] %v540
    %549 = vst [vmem:[#allocation2 + $0xd8] sm:$0xff] %v541
    %550 = vst [vmem:[#allocation2 + $0xe0] sm:$0xff] %v542
    %551 = vst [vmem:[#allocation2 + $0xe8] sm:$0xff] %v543
    %552 = vst [vmem:[#allocation2 + $0xf0] sm:$0xff] %v544
    %553 = vst [vmem:[#allocation2 + $0xf8] sm:$0xff] %v545
    %554 = vst [vmem:[#allocation2 + $0x100] sm:$0xff] %v273
    %555 = vst [vmem:[#allocation2 + $0x108] sm:$0xff] %v274
    %556 = vst [vmem:[#allocation2 + $0x110] sm:$0xff] %v275
    %557 = vst [vmem:[#allocation2 + $0x118] sm:$0xff] %v276
    %558 = vst [vmem:[#allocation2 + $0x120] sm:$0xff] %v277
    %559 = vst [vmem:[#allocation2 + $0x128] sm:$0xff] %v278
    %560 = vst [vmem:[#allocation2 + $0x130] sm:$0xff] %v279
    %561 = vst [vmem:[#allocation2 + $0x138] sm:$0xff] %v280
    %562 = vrot.lane.b32.xlu0 %v273, 127
    %v563 = vpop.permute.xlu0 %562
    %564 = vrot.lane.b32.xlu0 %v277, 127
    %v565 = vpop.permute.xlu0 %564
    %566 = vrot.lane.b32.xlu0 %v274, 127
    %v567 = vpop.permute.xlu0 %566
    %568 = vrot.lane.b32.xlu0 %v278, 127
    %v569 = vpop.permute.xlu0 %568
    %570 = vrot.lane.b32.xlu0 %v275, 127
    %v571 = vpop.permute.xlu0 %570
    %572 = vrot.lane.b32.xlu0 %v279, 127
    %v573 = vpop.permute.xlu0 %572
    %574 = vrot.lane.b32.xlu0 %v276, 127
    %v575 = vpop.permute.xlu0 %574
    %576 = vrot.lane.b32.xlu0 %v280, 127
    %v577 = vpop.permute.xlu0 %576
    %vm578 = vcmp.lt.s32.totalorder %v314, 127
    %v579 = vsel %vm578, %v571, %v575
    %v580 = vsel %vm578, %v573, %v577
    %v581 = vsel %vm578, %v567, %v571
    %v582 = vsel %vm578, %v569, %v573
    %v583 = vsel %vm578, %v563, %v567
    %v584 = vsel %vm578, %v565, %v569
    %v585 = vsel %vm578, %v575, %v563
    %v586 = vsel %vm578, %v577, %v565
    %s587 = scalar_lea.vmem %s6, 5
    %v588 = vld [vmem:[%s587] ss:$8 sm:$0xf]
    %v590 = vlaneseq
    %v591 = vshrl.u32 %v590, 7
    %v592 = vsub.s32 0, %v591
    %v593 = vrot.slane %v588, %v592
    %v594 = vlaneseq
    %v595 = vshrl.u32 %v594, 7
    %v596 = vsub.s32 1, %v595
    %v597 = vrot.slane %v588, %v596
    %v598 = vlaneseq
    %v599 = vshrl.u32 %v598, 7
    %v600 = vsub.s32 2, %v599
    %v601 = vrot.slane %v588, %v600
    %v602 = vlaneseq
    %v603 = vshrl.u32 %v602, 7
    %v604 = vsub.s32 3, %v603
    %v605 = vrot.slane %v588, %v604
    %v610 = vmul.f32 %v583, %v593
    %v611 = vmul.f32 %v581, %v597
    %v612 = vmul.f32 %v579, %v601
    %v613 = vmul.f32 %v585, %v605
    %v614 = vmul.f32 %v584, %v593
    %v615 = vmul.f32 %v582, %v597
    %v616 = vmul.f32 %v580, %v601
    %v617 = vmul.f32 %v586, %v605
    %618 = vst [vmem:[#allocation2 + $0x140] sm:$0xff] %v610
    %619 = vst [vmem:[#allocation2 + $0x148] sm:$0xff] %v611
    %620 = vst [vmem:[#allocation2 + $0x150] sm:$0xff] %v612
    %621 = vst [vmem:[#allocation2 + $0x158] sm:$0xff] %v613
    %622 = vst [vmem:[#allocation2 + $0x160] sm:$0xff] %v614
    %623 = vst [vmem:[#allocation2 + $0x168] sm:$0xff] %v615
    %624 = vst [vmem:[#allocation2 + $0x170] sm:$0xff] %v616
    %625 = vst [vmem:[#allocation2 + $0x178] sm:$0xff] %v617
    %626 = vrot.lane.b32.xlu0 %v273, 113
    %v627 = vpop.permute.xlu0 %626
    %628 = vrot.lane.b32.xlu0 %v277, 113
    %v629 = vpop.permute.xlu0 %628
    %630 = vrot.lane.b32.xlu0 %v274, 113
    %v631 = vpop.permute.xlu0 %630
    %632 = vrot.lane.b32.xlu0 %v278, 113
    %v633 = vpop.permute.xlu0 %632
    %634 = vrot.lane.b32.xlu0 %v275, 113
    %v635 = vpop.permute.xlu0 %634
    %636 = vrot.lane.b32.xlu0 %v279, 113
    %v637 = vpop.permute.xlu0 %636
    %638 = vrot.lane.b32.xlu0 %v276, 113
    %v639 = vpop.permute.xlu0 %638
    %640 = vrot.lane.b32.xlu0 %v280, 113
    %v641 = vpop.permute.xlu0 %640
    %vm642 = vcmp.lt.s32.totalorder %v314, 113
    %v643 = vsel %vm642, %v635, %v639
    %v644 = vsel %vm642, %v637, %v641
    %v645 = vsel %vm642, %v631, %v635
    %v646 = vsel %vm642, %v633, %v637
    %v647 = vsel %vm642, %v627, %v631
    %v648 = vsel %vm642, %v629, %v633
    %v649 = vsel %vm642, %v639, %v627
    %v650 = vsel %vm642, %v641, %v629
    %s651 = scalar_lea.vmem %s6, 6
    %v652 = vld [vmem:[%s651] ss:$8 sm:$0xf]
    %v654 = vlaneseq
    %v655 = vshrl.u32 %v654, 7
    %v656 = vsub.s32 0, %v655
    %v657 = vrot.slane %v652, %v656
    %v658 = vlaneseq
    %v659 = vshrl.u32 %v658, 7
    %v660 = vsub.s32 1, %v659
    %v661 = vrot.slane %v652, %v660
    %v662 = vlaneseq
    %v663 = vshrl.u32 %v662, 7
    %v664 = vsub.s32 2, %v663
    %v665 = vrot.slane %v652, %v664
    %v666 = vlaneseq
    %v667 = vshrl.u32 %v666, 7
    %v668 = vsub.s32 3, %v667
    %v669 = vrot.slane %v652, %v668
    %v674 = vmul.f32 %v647, %v657
    %v675 = vmul.f32 %v645, %v661
    %v676 = vmul.f32 %v643, %v665
    %v677 = vmul.f32 %v649, %v669
    %v678 = vmul.f32 %v648, %v657
    %v679 = vmul.f32 %v646, %v661
    %v680 = vmul.f32 %v644, %v665
    %v681 = vmul.f32 %v650, %v669
    %682 = vst [vmem:[#allocation2 + $0x180] sm:$0xff] %v674
    %683 = vst [vmem:[#allocation2 + $0x188] sm:$0xff] %v675
    %684 = vst [vmem:[#allocation2 + $0x190] sm:$0xff] %v676
    %685 = vst [vmem:[#allocation2 + $0x198] sm:$0xff] %v677
    %686 = vst [vmem:[#allocation2 + $0x1a0] sm:$0xff] %v678
    %687 = vst [vmem:[#allocation2 + $0x1a8] sm:$0xff] %v679
    %688 = vst [vmem:[#allocation2 + $0x1b0] sm:$0xff] %v680
    %689 = vst [vmem:[#allocation2 + $0x1b8] sm:$0xff] %v681
    %690 = vrot.lane.b32.xlu0 %v273, 112
    %v691 = vpop.permute.xlu0 %690
    %692 = vrot.lane.b32.xlu0 %v277, 112
    %v693 = vpop.permute.xlu0 %692
    %694 = vrot.lane.b32.xlu0 %v274, 112
    %v695 = vpop.permute.xlu0 %694
    %696 = vrot.lane.b32.xlu0 %v278, 112
    %v697 = vpop.permute.xlu0 %696
    %698 = vrot.lane.b32.xlu0 %v275, 112
    %v699 = vpop.permute.xlu0 %698
    %700 = vrot.lane.b32.xlu0 %v279, 112
    %v701 = vpop.permute.xlu0 %700
    %702 = vrot.lane.b32.xlu0 %v276, 112
    %v703 = vpop.permute.xlu0 %702
    %704 = vrot.lane.b32.xlu0 %v280, 112
    %v705 = vpop.permute.xlu0 %704
    %vm706 = vcmp.lt.s32.totalorder %v314, 112
    %v707 = vsel %vm706, %v699, %v703
    %v708 = vsel %vm706, %v701, %v705
    %v709 = vsel %vm706, %v695, %v699
    %v710 = vsel %vm706, %v697, %v701
    %v711 = vsel %vm706, %v691, %v695
    %v712 = vsel %vm706, %v693, %v697
    %v713 = vsel %vm706, %v703, %v691
    %v714 = vsel %vm706, %v705, %v693
    %s715 = scalar_lea.vmem %s6, 7
    %v716 = vld [vmem:[%s715] ss:$8 sm:$0xf]
    %v718 = vlaneseq
    %v719 = vshrl.u32 %v718, 7
    %v720 = vsub.s32 0, %v719
    %v721 = vrot.slane %v716, %v720
    %v722 = vlaneseq
    %v723 = vshrl.u32 %v722, 7
    %v724 = vsub.s32 1, %v723
    %v725 = vrot.slane %v716, %v724
    %v726 = vlaneseq
    %v727 = vshrl.u32 %v726, 7
    %v728 = vsub.s32 2, %v727
    %v729 = vrot.slane %v716, %v728
    %v730 = vlaneseq
    %v731 = vshrl.u32 %v730, 7
    %v732 = vsub.s32 3, %v731
    %v733 = vrot.slane %v716, %v732
    %v738 = vmul.f32 %v711, %v721
    %v739 = vmul.f32 %v709, %v725
    %v740 = vmul.f32 %v707, %v729
    %v741 = vmul.f32 %v713, %v733
    %v742 = vmul.f32 %v712, %v721
    %v743 = vmul.f32 %v710, %v725
    %v744 = vmul.f32 %v708, %v729
    %v745 = vmul.f32 %v714, %v733
    %746 = vst [vmem:[#allocation2 + $0x1c0] sm:$0xff] %v738
    %747 = vst [vmem:[#allocation2 + $0x1c8] sm:$0xff] %v739
    %748 = vst [vmem:[#allocation2 + $0x1d0] sm:$0xff] %v740
    %749 = vst [vmem:[#allocation2 + $0x1d8] sm:$0xff] %v741
    %750 = vst [vmem:[#allocation2 + $0x1e0] sm:$0xff] %v742
    %751 = vst [vmem:[#allocation2 + $0x1e8] sm:$0xff] %v743
    %752 = vst [vmem:[#allocation2 + $0x1f0] sm:$0xff] %v744
    %753 = vst [vmem:[#allocation2 + $0x1f8] sm:$0xff] %v745
    %754 = vrot.lane.b32.xlu0 %v273, 111
    %v755 = vpop.permute.xlu0 %754
    %756 = vrot.lane.b32.xlu0 %v277, 111
    %v757 = vpop.permute.xlu0 %756
    %758 = vrot.lane.b32.xlu0 %v274, 111
    %v759 = vpop.permute.xlu0 %758
    %760 = vrot.lane.b32.xlu0 %v278, 111
    %v761 = vpop.permute.xlu0 %760
    %762 = vrot.lane.b32.xlu0 %v275, 111
    %v763 = vpop.permute.xlu0 %762
    %764 = vrot.lane.b32.xlu0 %v279, 111
    %v765 = vpop.permute.xlu0 %764
    %766 = vrot.lane.b32.xlu0 %v276, 111
    %v767 = vpop.permute.xlu0 %766
    %768 = vrot.lane.b32.xlu0 %v280, 111
    %v769 = vpop.permute.xlu0 %768
    %vm770 = vcmp.lt.s32.totalorder %v314, 111
    %v771 = vsel %vm770, %v763, %v767
    %v772 = vsel %vm770, %v765, %v769
    %v773 = vsel %vm770, %v759, %v763
    %v774 = vsel %vm770, %v761, %v765
    %v775 = vsel %vm770, %v755, %v759
    %v776 = vsel %vm770, %v757, %v761
    %v777 = vsel %vm770, %v767, %v755
    %v778 = vsel %vm770, %v769, %v757
    %s779 = scalar_lea.vmem %s6, 32
    %v780 = vld [vmem:[%s779] ss:$8 sm:$0xf]
    %v782 = vlaneseq
    %v783 = vshrl.u32 %v782, 7
    %v784 = vsub.s32 0, %v783
    %v785 = vrot.slane %v780, %v784
    %v786 = vlaneseq
    %v787 = vshrl.u32 %v786, 7
    %v788 = vsub.s32 1, %v787
    %v789 = vrot.slane %v780, %v788
    %v790 = vlaneseq
    %v791 = vshrl.u32 %v790, 7
    %v792 = vsub.s32 2, %v791
    %v793 = vrot.slane %v780, %v792
    %v794 = vlaneseq
    %v795 = vshrl.u32 %v794, 7
    %v796 = vsub.s32 3, %v795
    %v797 = vrot.slane %v780, %v796
    %v802 = vmul.f32 %v775, %v785
    %v803 = vmul.f32 %v773, %v789
    %v804 = vmul.f32 %v771, %v793
    %v805 = vmul.f32 %v777, %v797
    %v806 = vmul.f32 %v776, %v785
    %v807 = vmul.f32 %v774, %v789
    %v808 = vmul.f32 %v772, %v793
    %v809 = vmul.f32 %v778, %v797
    %810 = vst [vmem:[#allocation2 + $0x200] sm:$0xff] %v802
    %811 = vst [vmem:[#allocation2 + $0x208] sm:$0xff] %v803
    %812 = vst [vmem:[#allocation2 + $0x210] sm:$0xff] %v804
    %813 = vst [vmem:[#allocation2 + $0x218] sm:$0xff] %v805
    %814 = vst [vmem:[#allocation2 + $0x220] sm:$0xff] %v806
    %815 = vst [vmem:[#allocation2 + $0x228] sm:$0xff] %v807
    %816 = vst [vmem:[#allocation2 + $0x230] sm:$0xff] %v808
    %817 = vst [vmem:[#allocation2 + $0x238] sm:$0xff] %v809
    %v818 = vld [vmem:[#allocation4] sm:$0xff]
    %v819 = vld [vmem:[#allocation4 + $0x8] sm:$0xff]
    %v820 = vld [vmem:[#allocation4 + $0x10] sm:$0xff]
    %v821 = vld [vmem:[#allocation4 + $0x18] sm:$0xff]
    %v822 = vld [vmem:[#allocation2] sm:$0xff]
    %v823 = vld [vmem:[#allocation2 + $0x8] sm:$0xff]
    %v824 = vld [vmem:[#allocation2 + $0x10] sm:$0xff]
    %v825 = vld [vmem:[#allocation2 + $0x18] sm:$0xff]
    %v826 = vld [vmem:[#allocation2 + $0x20] sm:$0xff]
    %v827 = vld [vmem:[#allocation2 + $0x28] sm:$0xff]
    %v828 = vld [vmem:[#allocation2 + $0x30] sm:$0xff]
    %v829 = vld [vmem:[#allocation2 + $0x38] sm:$0xff]
    %v830 = vld [vmem:[#allocation2 + $0x40] sm:$0xff]
    %v831 = vld [vmem:[#allocation2 + $0x48] sm:$0xff]
    %v832 = vld [vmem:[#allocation2 + $0x50] sm:$0xff]
    %v833 = vld [vmem:[#allocation2 + $0x58] sm:$0xff]
    %v834 = vld [vmem:[#allocation2 + $0x60] sm:$0xff]
    %v835 = vld [vmem:[#allocation2 + $0x68] sm:$0xff]
    %v836 = vld [vmem:[#allocation2 + $0x70] sm:$0xff]
    %v837 = vld [vmem:[#allocation2 + $0x78] sm:$0xff]
    %v838 = vld [vmem:[#allocation2 + $0x80] sm:$0xff]
    %v839 = vld [vmem:[#allocation2 + $0x88] sm:$0xff]
    %v840 = vld [vmem:[#allocation2 + $0x90] sm:$0xff]
    %v841 = vld [vmem:[#allocation2 + $0x98] sm:$0xff]
    %v842 = vld [vmem:[#allocation2 + $0xa0] sm:$0xff]
    %v843 = vld [vmem:[#allocation2 + $0xa8] sm:$0xff]
    %v844 = vld [vmem:[#allocation2 + $0xb0] sm:$0xff]
    %v845 = vld [vmem:[#allocation2 + $0xb8] sm:$0xff]
    %v846 = vld [vmem:[#allocation2 + $0xc0] sm:$0xff]
    %v847 = vld [vmem:[#allocation2 + $0xc8] sm:$0xff]
    %v848 = vld [vmem:[#allocation2 + $0xd0] sm:$0xff]
    %v849 = vld [vmem:[#allocation2 + $0xd8] sm:$0xff]
    %v850 = vld [vmem:[#allocation2 + $0xe0] sm:$0xff]
    %v851 = vld [vmem:[#allocation2 + $0xe8] sm:$0xff]
    %v852 = vld [vmem:[#allocation2 + $0xf0] sm:$0xff]
    %v853 = vld [vmem:[#allocation2 + $0xf8] sm:$0xff]
    %v854 = vld [vmem:[#allocation2 + $0x100] sm:$0xff]
    %v855 = vld [vmem:[#allocation2 + $0x108] sm:$0xff]
    %v856 = vld [vmem:[#allocation2 + $0x110] sm:$0xff]
    %v857 = vld [vmem:[#allocation2 + $0x118] sm:$0xff]
    %v858 = vld [vmem:[#allocation2 + $0x120] sm:$0xff]
    %v859 = vld [vmem:[#allocation2 + $0x128] sm:$0xff]
    %v860 = vld [vmem:[#allocation2 + $0x130] sm:$0xff]
    %v861 = vld [vmem:[#allocation2 + $0x138] sm:$0xff]
    %v862 = vld [vmem:[#allocation2 + $0x140] sm:$0xff]
    %v863 = vld [vmem:[#allocation2 + $0x148] sm:$0xff]
    %v864 = vld [vmem:[#allocation2 + $0x150] sm:$0xff]
    %v865 = vld [vmem:[#allocation2 + $0x158] sm:$0xff]
    %v866 = vld [vmem:[#allocation2 + $0x160] sm:$0xff]
    %v867 = vld [vmem:[#allocation2 + $0x168] sm:$0xff]
    %v868 = vld [vmem:[#allocation2 + $0x170] sm:$0xff]
    %v869 = vld [vmem:[#allocation2 + $0x178] sm:$0xff]
    %v870 = vld [vmem:[#allocation2 + $0x180] sm:$0xff]
    %v871 = vld [vmem:[#allocation2 + $0x188] sm:$0xff]
    %v872 = vld [vmem:[#allocation2 + $0x190] sm:$0xff]
    %v873 = vld [vmem:[#allocation2 + $0x198] sm:$0xff]
    %v874 = vld [vmem:[#allocation2 + $0x1a0] sm:$0xff]
    %v875 = vld [vmem:[#allocation2 + $0x1a8] sm:$0xff]
    %v876 = vld [vmem:[#allocation2 + $0x1b0] sm:$0xff]
    %v877 = vld [vmem:[#allocation2 + $0x1b8] sm:$0xff]
    %v878 = vld [vmem:[#allocation2 + $0x1c0] sm:$0xff]
    %v879 = vld [vmem:[#allocation2 + $0x1c8] sm:$0xff]
    %v880 = vld [vmem:[#allocation2 + $0x1d0] sm:$0xff]
    %v881 = vld [vmem:[#allocation2 + $0x1d8] sm:$0xff]
    %v882 = vld [vmem:[#allocation2 + $0x1e0] sm:$0xff]
    %v883 = vld [vmem:[#allocation2 + $0x1e8] sm:$0xff]
    %v884 = vld [vmem:[#allocation2 + $0x1f0] sm:$0xff]
    %v885 = vld [vmem:[#allocation2 + $0x1f8] sm:$0xff]
    %v886 = vld [vmem:[#allocation2 + $0x200] sm:$0xff]
    %v887 = vld [vmem:[#allocation2 + $0x208] sm:$0xff]
    %v888 = vld [vmem:[#allocation2 + $0x210] sm:$0xff]
    %v889 = vld [vmem:[#allocation2 + $0x218] sm:$0xff]
    %v890 = vld [vmem:[#allocation2 + $0x220] sm:$0xff]
    %v891 = vld [vmem:[#allocation2 + $0x228] sm:$0xff]
    %v892 = vld [vmem:[#allocation2 + $0x230] sm:$0xff]
    %v893 = vld [vmem:[#allocation2 + $0x238] sm:$0xff]
    %894 = vset.pattern.permute.xlu0 1
    %895 = vperm.xlu0 %894, %v45
    %v896 = vpop.permute.xlu0 %895
    %898 = vset.pattern.permute.xlu0 1
    %899 = vperm.xlu0 %898, %v46
    %v900 = vpop.permute.xlu0 %899
    %vm902 = vcmask 130048
    %v904 = vsel %vm902, %v819, 0
    %v907 = vsel %vm902, %v821, 0
    %909 = vmatprep.subr.mxu0 %v883
    %910 = vmatpush1.msra.mxu0 %v882
    %911 = vmatprep.subr.mxu0 %v879
    %912 = vmatpush1.msra.mxu0 %v878
    %913 = vmatprep.subr.mxu0 %v875
    %914 = vmatpush1.msra.mxu0 %v874
    %915 = vmatprep.subr.mxu0 %v871
    %916 = vmatpush1.msra.mxu0 %v870
    %917 = vmatprep.subr.mxu0 %v867
    %918 = vmatpush1.msra.mxu0 %v866
    %919 = vmatprep.subr.mxu0 %v863
    %920 = vmatpush1.msra.mxu0 %v862
    %921 = vmatprep.subr.mxu0 %v859
    %922 = vmatpush1.msra.mxu0 %v858
    %923 = vmatprep.subr.mxu0 %v855
    %924 = vmatpush1.msra.mxu0 %v854
    %925 = vmatprep.subr.mxu0 %v851
    %926 = vmatpush1.msra.mxu0 %v850
    %927 = vmatprep.subr.mxu0 %v847
    %928 = vmatpush1.msra.mxu0 %v846
    %929 = vmatprep.subr.mxu0 %v843
    %930 = vmatpush1.msra.mxu0 %v842
    %931 = vmatprep.subr.mxu0 %v839
    %932 = vmatpush1.msra.mxu0 %v838
    %933 = vmatprep.subr.mxu0 %v835
    %934 = vmatpush1.msra.mxu0 %v834
    %935 = vmatprep.subr.mxu0 %v831
    %936 = vmatpush1.msra.mxu0 %v830
    %937 = vmatprep.subr.mxu0 %v827
    %938 = vmatpush1.msra.mxu0 %v826
    %939 = vmatprep.subr.mxu0 %v823
    %940 = vmatpush1.msra.mxu0 %v822
    %941 = vmatprep.subr.mxu0 0.0
    %942 = vmatpush2.msra.mxu0 0.0
    %943 = vmatprep.subr.mxu0 0.0
    %944 = vmatpush2.msra.mxu0 0.0
    %945 = vmatprep.subr.mxu0 0.0
    %946 = vmatpush2.msra.mxu0 0.0
    %947 = vmatprep.subr.mxu0 0.0
    %948 = vmatpush2.msra.mxu0 0.0
    %949 = vmatprep.subr.mxu0 0.0
    %950 = vmatpush2.msra.mxu0 0.0
    %951 = vmatprep.subr.mxu0 0.0
    %952 = vmatpush2.msra.mxu0 0.0
    %953 = vmatprep.subr.mxu0 0.0
    %954 = vmatpush2.msra.mxu0 0.0
    %955 = vmatprep.subr.mxu0 0.0
    %956 = vmatpush2.msra.mxu0 0.0
    %957 = vmatprep.subr.mxu0 0.0
    %958 = vmatpush2.msra.mxu0 0.0
    %959 = vmatprep.subr.mxu0 0.0
    %960 = vmatpush2.msra.mxu0 0.0
    %961 = vmatprep.subr.mxu0 0.0
    %962 = vmatpush2.msra.mxu0 0.0
    %963 = vmatprep.subr.mxu0 0.0
    %964 = vmatpush2.msra.mxu0 0.0
    %965 = vmatprep.subr.mxu0 0.0
    %966 = vmatpush2.msra.mxu0 0.0
    %967 = vmatprep.subr.mxu0 0.0
    %968 = vmatpush2.msra.mxu0 0.0
    %969 = vmatprep.subr.mxu0 %v891
    %970 = vmatpush2.msra.mxu0 %v890
    %971 = vmatprep.subr.mxu0 %v887
    %972 = vmatpush2.msra.mxu0 %v886
    %973 = vmatprep.mubr.f32.mxu0 %v904
    %974 = vmatmul.mubr.f32.gmra.mxu0 %v818
    %v975 = vpop.f32.mrf.mxu0
    %v976 = vadd.f32 %v896, %v975
    %v977 = vpop.f32.mrf.mxu0
    %v978 = vadd.f32 %v896, %v977
    %979 = vmatprep.mubr.f32.mxu0 %v907
    %980 = vmatmul.mubr.f32.gmra.mxu0 %v820
    %v981 = vpop.f32.mrf.mxu0
    %v982 = vadd.f32 %v900, %v981
    %v983 = vpop.f32.mrf.mxu0
    %v984 = vadd.f32 %v900, %v983
    %985 = vdwg.mxu0
    %986 = vmatprep.subr.mxu0 %v885
    %987 = vmatpush1.msra.mxu0 %v884
    %988 = vmatprep.subr.mxu0 %v881
    %989 = vmatpush1.msra.mxu0 %v880
    %990 = vmatprep.subr.mxu0 %v877
    %991 = vmatpush1.msra.mxu0 %v876
    %992 = vmatprep.subr.mxu0 %v873
    %993 = vmatpush1.msra.mxu0 %v872
    %994 = vmatprep.subr.mxu0 %v869
    %995 = vmatpush1.msra.mxu0 %v868
    %996 = vmatprep.subr.mxu0 %v865
    %997 = vmatpush1.msra.mxu0 %v864
    %998 = vmatprep.subr.mxu0 %v861
    %999 = vmatpush1.msra.mxu0 %v860
    %1000 = vmatprep.subr.mxu0 %v857
    %1001 = vmatpush1.msra.mxu0 %v856
    %1002 = vmatprep.subr.mxu0 %v853
    %1003 = vmatpush1.msra.mxu0 %v852
    %1004 = vmatprep.subr.mxu0 %v849
    %1005 = vmatpush1.msra.mxu0 %v848
    %1006 = vmatprep.subr.mxu0 %v845
    %1007 = vmatpush1.msra.mxu0 %v844
    %1008 = vmatprep.subr.mxu0 %v841
    %1009 = vmatpush1.msra.mxu0 %v840
    %1010 = vmatprep.subr.mxu0 %v837
    %1011 = vmatpush1.msra.mxu0 %v836
    %1012 = vmatprep.subr.mxu0 %v833
    %1013 = vmatpush1.msra.mxu0 %v832
    %1014 = vmatprep.subr.mxu0 %v829
    %1015 = vmatpush1.msra.mxu0 %v828
    %1016 = vmatprep.subr.mxu0 %v825
    %1017 = vmatpush1.msra.mxu0 %v824
    %1018 = vmatprep.subr.mxu0 0.0
    %1019 = vmatpush2.msra.mxu0 0.0
    %1020 = vmatprep.subr.mxu0 0.0
    %1021 = vmatpush2.msra.mxu0 0.0
    %1022 = vmatprep.subr.mxu0 0.0
    %1023 = vmatpush2.msra.mxu0 0.0
    %1024 = vmatprep.subr.mxu0 0.0
    %1025 = vmatpush2.msra.mxu0 0.0
    %1026 = vmatprep.subr.mxu0 0.0
    %1027 = vmatpush2.msra.mxu0 0.0
    %1028 = vmatprep.subr.mxu0 0.0
    %1029 = vmatpush2.msra.mxu0 0.0
    %1030 = vmatprep.subr.mxu0 0.0
    %1031 = vmatpush2.msra.mxu0 0.0
    %1032 = vmatprep.subr.mxu0 0.0
    %1033 = vmatpush2.msra.mxu0 0.0
    %1034 = vmatprep.subr.mxu0 0.0
    %1035 = vmatpush2.msra.mxu0 0.0
    %1036 = vmatprep.subr.mxu0 0.0
    %1037 = vmatpush2.msra.mxu0 0.0
    %1038 = vmatprep.subr.mxu0 0.0
    %1039 = vmatpush2.msra.mxu0 0.0
    %1040 = vmatprep.subr.mxu0 0.0
    %1041 = vmatpush2.msra.mxu0 0.0
    %1042 = vmatprep.subr.mxu0 0.0
    %1043 = vmatpush2.msra.mxu0 0.0
    %1044 = vmatprep.subr.mxu0 0.0
    %1045 = vmatpush2.msra.mxu0 0.0
    %1046 = vmatprep.subr.mxu0 %v893
    %1047 = vmatpush2.msra.mxu0 %v892
    %1048 = vmatprep.subr.mxu0 %v889
    %1049 = vmatpush2.msra.mxu0 %v888
    %1050 = vmatprep.mubr.f32.mxu0 %v904
    %1051 = vmatmul.mubr.f32.gmra.mxu0 %v818
    %v1052 = vpop.f32.mrf.mxu0
    %v1053 = vadd.f32 %v896, %v1052
    %v1054 = vpop.f32.mrf.mxu0
    %v1055 = vadd.f32 %v896, %v1054
    %1056 = vmatprep.mubr.f32.mxu0 %v907
    %1057 = vmatmul.mubr.f32.gmra.mxu0 %v820
    %v1058 = vpop.f32.mrf.mxu0
    %v1059 = vadd.f32 %v900, %v1058
    %v1060 = vpop.f32.mrf.mxu0
    %v1061 = vadd.f32 %v900, %v1060
    %1062 = vdwg.mxu0
    %v1063 = vadd.f32 %v976, %v289
    %v1064 = vadd.f32 %v978, %v290
    %v1065 = vadd.f32 %v1053, %v291
    %v1066 = vadd.f32 %v1055, %v292
    %v1067 = vadd.f32 %v982, %v293
    %v1068 = vadd.f32 %v984, %v294
    %v1069 = vadd.f32 %v1059, %v295
    %v1070 = vadd.f32 %v1061, %v296
    %v1071 = vmax.f32 %v1063, 0.0
    %v1072 = vmax.f32 %v1064, 0.0
    %v1073 = vmax.f32 %v1065, 0.0
    %v1074 = vmax.f32 %v1066, 0.0
    %v1075 = vmax.f32 %v1067, 0.0
    %v1076 = vmax.f32 %v1068, 0.0
    %v1077 = vmax.f32 %v1069, 0.0
    %v1078 = vmax.f32 %v1070, 0.0
    %v1079 = vld [vmem:[%s4] sm:$0xff]
    %v1080 = vld [vmem:[%s4 + $0x8] sm:$0xff]
    %v1081 = vld [vmem:[#allocation3] sm:$0x1]
    %v1082 = vadd.f32 %v1071, %v1072
    %1083 = vadd.xlane.f32.xlu0 %v1082
    %v1084 = vpop.xlane.xlu0 %1083
    %v1085 = vadd.f32 %v1075, %v1076
    %1086 = vadd.xlane.f32.xlu0 %v1085
    %v1087 = vpop.xlane.xlu0 %1086
    %v1088 = vrcp.pop 256.0
    %v1089 = vmul.f32 %v1084, %v1088
    %v1090 = vmul.f32 %v1087, %v1088
    %v1091 = vmul.f32 %v1079, %v1089
    %v1092 = vmul.f32 %v1080, %v1090
    %vm1093 = vcmask 7168
    %v1094 = vsel %vm1093, %v1091, 0.0
    %v1095 = vsel %vm1093, %v1092, 0.0
    %v1096 = vadd.f32 %v1094, %v1095
    %v1097 = vrot.slane %v1096, 4
    %v1098 = vadd.f32 %v1096, %v1097
    %v1099 = vrot.slane %v1098, 2
    %v1100 = vadd.f32 %v1098, %v1099
    %v1101 = vrot.slane %v1100, 1
    %v1102 = vadd.f32 %v1100, %v1101
    %v1103 = vadd.f32 %v1102, %v1081
    %v1104 = vmax.f32 %v1103, 0.0
    %v1105 = vlaneseq
    %v1106 = vshrl.u32 %v1105, 7
    %v1107 = vsub.s32 0, %v1106
    %v1108 = vrot.slane %v1104, %v1107
    %1110 = vrot.lane.b32.xlu0 %v1108, 1
    %v1111 = vpop.permute.xlu0 %1110
    %v1113 = vmul.f32 %v1079, %v1111
    %v1114 = vmul.f32 %v1080, %v1111
    %v1115 = vadd.f32 %v1113, 0.0
    %v1116 = vadd.f32 %v1114, 0.0
    %1117 = vrot.lane.b32.xlu0 %v45, 126
    %v1118 = vpop.permute.xlu0 %1117
    %1119 = vrot.lane.b32.xlu0 %v46, 126
    %v1120 = vpop.permute.xlu0 %1119
    %v1123 = vadd.f32 %v1115, %v1118
    %v1124 = vadd.f32 %v1116, %v1120
    %v1125 = vxor.u32 %v1123, 2147483648
    %v1126 = vxor.u32 %v1124, 2147483648
    %v1127 = vmul.f32 %v1125, 1.442695
    %v1128 = vpow.pop %v1127
    %v1129 = vmul.f32 %v1126, 1.442695
    %v1130 = vpow.pop %v1129
    %v1131 = vadd.f32 %v1128, 1.0
    %v1132 = vadd.f32 %v1130, 1.0
    %v1133 = vrcp.pop %v1131
    %v1134 = vmul.f32 1.0, %v1133
    %v1135 = vrcp.pop %v1132
    %v1136 = vmul.f32 1.0, %v1135
    %1138 = vset.pattern.permute.xlu0 1
    %1139 = vperm.xlu0 %1138, %v1134
    %v1140 = vpop.permute.xlu0 %1139
    %1143 = vset.pattern.permute.xlu0 1
    %1144 = vperm.xlu0 %1143, %v1136
    %v1145 = vpop.permute.xlu0 %1144
    %v1147 = vmul.f32 %v1071, %v1140
    %v1148 = vmul.f32 %v1072, %v1140
    %v1149 = vmul.f32 %v1075, %v1145
    %v1150 = vmul.f32 %v1076, %v1145
    %1151 = vst [vmem:[#allocation7] sm:$0xff] %v1147
    %1152 = vst [vmem:[#allocation7 + $0x8] sm:$0xff] %v1148
    %1153 = vst [vmem:[#allocation7 + $0x10] sm:$0xff] %v1149
    %1154 = vst [vmem:[#allocation7 + $0x18] sm:$0xff] %v1150
    %v1155 = vadd.f32 %v1073, %v1074
    %1156 = vadd.xlane.f32.xlu0 %v1155
    %v1157 = vpop.xlane.xlu0 %1156
    %v1158 = vadd.f32 %v1077, %v1078
    %1159 = vadd.xlane.f32.xlu0 %v1158
    %v1160 = vpop.xlane.xlu0 %1159
    %v1161 = vmul.f32 %v1157, %v1088
    %v1162 = vmul.f32 %v1160, %v1088
    %v1163 = vmul.f32 %v1079, %v1161
    %v1164 = vmul.f32 %v1080, %v1162
    %v1165 = vsel %vm1093, %v1163, 0.0
    %v1166 = vsel %vm1093, %v1164, 0.0
    %v1167 = vadd.f32 %v1165, %v1166
    %v1168 = vrot.slane %v1167, 4
    %v1169 = vadd.f32 %v1167, %v1168
    %v1170 = vrot.slane %v1169, 2
    %v1171 = vadd.f32 %v1169, %v1170
    %v1172 = vrot.slane %v1171, 1
    %v1173 = vadd.f32 %v1171, %v1172
    %v1174 = vadd.f32 %v1173, %v1081
    %v1175 = vmax.f32 %v1174, 0.0
    %v1176 = vlaneseq
    %v1177 = vshrl.u32 %v1176, 7
    %v1178 = vsub.s32 0, %v1177
    %v1179 = vrot.slane %v1175, %v1178
    %1181 = vrot.lane.b32.xlu0 %v1179, 1
    %v1182 = vpop.permute.xlu0 %1181
    %v1184 = vmul.f32 %v1079, %v1182
    %v1185 = vmul.f32 %v1080, %v1182
    %v1186 = vadd.f32 %v1184, 0.0
    %v1187 = vadd.f32 %v1185, 0.0
    %v1188 = vadd.f32 %v1186, %v1118
    %v1189 = vadd.f32 %v1187, %v1120
    %v1190 = vxor.u32 %v1188, 2147483648
    %v1191 = vxor.u32 %v1189, 2147483648
    %v1192 = vmul.f32 %v1190, 1.442695
    %v1193 = vpow.pop %v1192
    %v1194 = vmul.f32 %v1191, 1.442695
    %v1195 = vpow.pop %v1194
    %v1196 = vadd.f32 %v1193, 1.0
    %v1197 = vadd.f32 %v1195, 1.0
    %v1198 = vrcp.pop %v1196
    %v1199 = vmul.f32 1.0, %v1198
    %v1200 = vrcp.pop %v1197
    %v1201 = vmul.f32 1.0, %v1200
    %1203 = vset.pattern.permute.xlu0 1
    %1204 = vperm.xlu0 %1203, %v1199
    %v1205 = vpop.permute.xlu0 %1204
    %1208 = vset.pattern.permute.xlu0 1
    %1209 = vperm.xlu0 %1208, %v1201
    %v1210 = vpop.permute.xlu0 %1209
    %v1212 = vmul.f32 %v1073, %v1205
    %v1213 = vmul.f32 %v1074, %v1205
    %v1214 = vmul.f32 %v1077, %v1210
    %v1215 = vmul.f32 %v1078, %v1210
    %s1216 = scalar_lea.vmem [#allocation7], 32
    %1217 = vst [vmem:[%s1216] sm:$0xff] %v1212
    %1218 = vst [vmem:[%s1216 + $0x8] sm:$0xff] %v1213
    %1219 = vst [vmem:[%s1216 + $0x10] sm:$0xff] %v1214
    %1220 = vst [vmem:[%s1216 + $0x18] sm:$0xff] %v1215
    // Predicated region
    $region34: #{tpu_custom_call.1} parent=1 // pred_check
      _
    $region35: #{tpu_custom_call.1} parent=1 // pred_check_branch
      %1222 = sbr.rel (0) target = $region37
    $region36: #{tpu_custom_call.1} parent=1 // pred_region
      %s1224 = ssub.s32 1024, 1024
      %1225 = vsyncadd [#allocation6], %s1224
      %s1226 = sshll.u32 [#allocation7], 4
      %s1227 = int_to_ptr.vmem [resolvable:$true] %s1226
      %1232 = dma.vmem_to_hbm [thread:$0]  %s1227, 1024, %s7, [#allocation6], 256, 256, 16
    $region37: #{tpu_custom_call.1} parent=1 // pred_fallthru
      _
    // Predicated region
    $region38: #{tpu_custom_call.1} parent=1 // pred_check
      _
    $region39: #{tpu_custom_call.1} parent=1 // pred_check_branch
      %1234 = sbr.rel (0) target = $region41
    $region40: #{tpu_custom_call.1} parent=1 // pred_region
      %1235 = dma.done [#allocation6], 1024
    $region41: #{tpu_custom_call.1} parent=1 // pred_fallthru
      _
    %1236 = vsyncpa [#allocation5], 1
    %1237 = vsyncpa [#allocation6], 1

</llo_original>
